<compile_context>
chip_gen: v7x
topology: tpu7x:2x2x1
jax: 0.10.0
libtpu: 0.0.40
codegen_flags: <defaults>
</compile_context>

<pallas_src>
import functools

import jax
import jax.numpy as jnp
from jax import lax
from jax.experimental import pallas as pl
from jax.experimental.pallas import tpu as pltpu


def _conv_bn_act_kernel(x_ref, w_ref, bias_ref, o_ref, *,
                        k, stride, hout, wout, alpha):
    # x_ref:    (N, Cin, Hp, Wp)       bf16, spatially padded NCHW batch
    # w_ref:    (Cout, K*K*Cin)        bf16, BN scale folded; cols ordered ((kh,kw), cin)
    # bias_ref: (Cout, 1)              f32 folded BN bias
    # o_ref:    (N, Cout, Hout*Wout)   f32 output (lane-dense: HW on the lane axis)
    n, cin = x_ref.shape[0], x_ref.shape[1]
    hw = hout * wout
    hs = (hout - 1) * stride + 1
    ws = (wout - 1) * stride + 1

    x = x_ref[...]                                              # (N, Cin, Hp, Wp) bf16

    # im2col built entirely in registers (no VMEM scratch, no dtype round-trip):
    # rows ordered tap-major / cin-minor to match w_ref's column ordering.
    patches = [x[:, :, kh:kh + hs:stride, kw:kw + ws:stride]    # (N, Cin, Hout, Wout)
               for kh in range(k) for kw in range(k)]
    col = jnp.concatenate(patches, axis=1)                      # (N, K*K*Cin, Hout, Wout)
    col = col.reshape(n, k * k * cin, hw)                       # single (H,W)->HW lane flatten

    w = w_ref[...]                                              # (Cout, K*K*Cin) bf16
    bias = bias_ref[...]                                        # (Cout, 1) f32
    for b in range(n):                                          # static unroll (N=2)
        # MXU: (Cout, K*K*Cin) x (K*K*Cin, HW) -> (Cout, HW), f32 accumulation.
        acc = jnp.dot(w, col[b], preferred_element_type=jnp.float32)
        y = acc + bias                                          # folded BN bias
        o_ref[b] = jnp.where(y > 0, y, alpha * y).astype(o_ref.dtype)   # LeakyReLU


def basic_conv1(x_nchw, weight_oihw, gamma, beta, running_mean, running_var,
                *, stride=1, eps=1e-5, alpha=0.1):
    """Forward pass of BasicConv1. Input NCHW, output NCHW (PyTorch convention)."""
    n, cin, h, w = x_nchw.shape
    cout, cin_w, k, k2 = weight_oihw.shape
    assert cin == cin_w and k == k2
    pad = k // 2
    hout = (h + 2 * pad - k) // stride + 1
    wout = (w + 2 * pad - k) // stride + 1
    hp, wp = h + 2 * pad, w + 2 * pad

    # Fold eval-mode BatchNorm into the conv weights (scale) and a per-channel bias.
    scale = gamma.astype(jnp.float32) / jnp.sqrt(running_var.astype(jnp.float32) + eps)
    bias = (beta.astype(jnp.float32)
            - running_mean.astype(jnp.float32) * scale).reshape(cout, 1)

    # Weights: OIHW -> (Cout, K*K*Cin), columns ordered ((kh,kw), cin), scale folded, bf16.
    w_mat = jnp.transpose(weight_oihw.astype(jnp.float32) * scale[:, None, None, None],
                          (0, 2, 3, 1)).reshape(cout, k * k * cin).astype(jnp.bfloat16)

    # Spatial 'same' padding + bf16 cast (stays NCHW; no layout transposes).
    x_pad = jnp.pad(x_nchw.astype(jnp.bfloat16),
                    ((0, 0), (0, 0), (pad, pad), (pad, pad)))

    kernel = functools.partial(_conv_bn_act_kernel, k=k, stride=stride,
                               hout=hout, wout=wout, alpha=alpha)
    # Output stays f32 to match the PyTorch module's dtype; switch the out_shape
    # dtype (and the cast in the kernel epilogue) to bf16 if the consumer allows
    # it — it halves output HBM writeback at larger shapes.
    out_flat = pl.pallas_call(
        kernel,
        out_shape=jax.ShapeDtypeStruct((n, cout, hout * wout), jnp.float32),
        grid_spec=pltpu.PrefetchScalarGridSpec(
            num_scalar_prefetch=0,
            grid=(1,),
            in_specs=[
                pl.BlockSpec((n, cin, hp, wp), lambda i: (0, 0, 0, 0)),
                pl.BlockSpec((cout, k * k * cin), lambda i: (0, 0)),
                pl.BlockSpec((cout, 1), lambda i: (0, 0)),
            ],
            out_specs=pl.BlockSpec((n, cout, hout * wout), lambda i: (0, 0, 0)),
        ),
        compiler_params=pltpu.CompilerParams(
            dimension_semantics=("arbitrary",)),
    )(x_pad, w_mat, bias)

    # Free contiguous reshape: (N, Cout, Hout*Wout) -> (N, Cout, Hout, Wout).
    return out_flat.reshape(n, cout, hout, wout)


def _reference(x, weight, gamma, beta, running_mean, running_var,
               *, stride=1, eps=1e-5, alpha=0.1, bf16_inputs=False):
    """Pure-JAX reference mirroring the PyTorch forward (BN in eval mode).

    With bf16_inputs=True it applies the same precision policy as the kernel
    (BN scale folded into weights, activations/weights rounded to bf16,
    f32 accumulation), giving a tight comparison target.
    """
    k = weight.shape[-1]
    scale = gamma.astype(jnp.float32) / jnp.sqrt(running_var.astype(jnp.float32) + eps)
    w = weight.astype(jnp.float32) * scale[:, None, None, None]
    xr = x.astype(jnp.float32)
    if bf16_inputs:
        w = w.astype(jnp.bfloat16).astype(jnp.float32)
        xr = xr.astype(jnp.bfloat16).astype(jnp.float32)
    y = lax.conv_general_dilated(
        xr, w, window_strides=(stride, stride),
        padding=[(k // 2, k // 2), (k // 2, k // 2)],
        dimension_numbers=("NCHW", "OIHW", "NCHW"),
        preferred_element_type=jnp.float32,
        precision=lax.Precision.HIGHEST,
    )
    bias = (beta.astype(jnp.float32) - running_mean.astype(jnp.float32) * scale)
    y = y + bias.reshape(1, -1, 1, 1)
    return jnp.where(y > 0, y, alpha * y)


if __name__ == "__main__":
    # Small shapes consistent with the module: N=2, Cin=4, Cout=8, H=W=16, k=3.
    key = jax.random.PRNGKey(0)
    k_x, k_w, k_g, k_b, k_m, k_v = jax.random.split(key, 6)

    N, CIN, COUT, H, W, K = 2, 4, 8, 16, 16, 3
    x = jax.random.normal(k_x, (N, CIN, H, W), jnp.float32)
    # "Kaiming-ish" conv weight init (no bias, per nn.Conv2d(bias=False)).
    weight = jax.random.normal(k_w, (COUT, CIN, K, K), jnp.float32) * (1.0 / (CIN * K * K) ** 0.5)
    # BatchNorm parameters / running stats (inference mode).
    gamma = 1.0 + 0.1 * jax.random.normal(k_g, (COUT,), jnp.float32)
    beta = 0.1 * jax.random.normal(k_b, (COUT,), jnp.float32)
    running_mean = 0.1 * jax.random.normal(k_m, (COUT,), jnp.float32)
    running_var = jnp.abs(1.0 + 0.1 * jax.random.normal(k_v, (COUT,), jnp.float32))

    out = basic_conv1(x, weight, gamma, beta, running_mean, running_var, stride=1)
    out = jax.block_until_ready(out)
    assert out.shape == (N, COUT, H, W), out.shape

    # Tight check vs. a reference using the same bf16 precision policy.
    ref_matched = _reference(x, weight, gamma, beta, running_mean, running_var,
                             stride=1, bf16_inputs=True)
    err_m = float(jnp.max(jnp.abs(out - ref_matched)))
    assert jnp.allclose(out, ref_matched, atol=2e-4, rtol=2e-4), err_m

    # Looser sanity check vs. the pure-f32 PyTorch-equivalent forward.
    ref_f32 = _reference(x, weight, gamma, beta, running_mean, running_var,
                         stride=1, bf16_inputs=False)
    err_f = float(jnp.max(jnp.abs(out - ref_f32)))
    assert jnp.allclose(out, ref_f32, atol=5e-2, rtol=5e-2), err_f

    print("KERNEL_OK")
</pallas_src>

<mosaic_0001>
module attributes {stable_mosaic.version = 11 : i64} {
  func.func @_conv_bn_act_kernel(%arg0: i32, %arg1: memref<2x4x18x18xbf16, #tpu.memory_space<vmem>>, %arg2: memref<8x36xbf16, #tpu.memory_space<vmem>>, %arg3: memref<8x1xf32, #tpu.memory_space<vmem>>, %arg4: memref<2x8x256xf32, #tpu.memory_space<vmem>>) attributes {dimension_semantics = [#tpu.dimension_semantics<arbitrary>], iteration_bounds = array<i64: 1>, scalar_prefetch = 0 : i64, scratch_operands = 0 : i64, tpu.core_type = #tpu.core_type<tc>, window_params = [{pipeline_mode = #tpu.pipeline_mode<synchronous>, transform_indices = @transform_0, window_bounds = array<i64: 2, 4, 18, 18>}, {pipeline_mode = #tpu.pipeline_mode<synchronous>, transform_indices = @transform_1, window_bounds = array<i64: 8, 36>}, {pipeline_mode = #tpu.pipeline_mode<synchronous>, transform_indices = @transform_2, window_bounds = array<i64: 8, 1>}, {pipeline_mode = #tpu.pipeline_mode<synchronous>, transform_indices = @transform_3, window_bounds = array<i64: 2, 8, 256>}]} {
    %c0 = arith.constant 0 : index
    %c0_0 = arith.constant 0 : index
    %c0_1 = arith.constant 0 : index
    %c0_2 = arith.constant 0 : index
    %0 = vector.load %arg1[%c0, %c0_0, %c0_1, %c0_2] : memref<2x4x18x18xbf16, #tpu.memory_space<vmem>>, vector<2x4x18x18xbf16>
    %1 = vector.extract_strided_slice %0 {offsets = [0, 0, 0, 0], sizes = [2, 4, 16, 16], strides = [1, 1, 1, 1]} : vector<2x4x18x18xbf16> to vector<2x4x16x16xbf16>
    %2 = vector.extract_strided_slice %0 {offsets = [0, 0, 0, 1], sizes = [2, 4, 16, 16], strides = [1, 1, 1, 1]} : vector<2x4x18x18xbf16> to vector<2x4x16x16xbf16>
    %3 = vector.extract_strided_slice %0 {offsets = [0, 0, 0, 2], sizes = [2, 4, 16, 16], strides = [1, 1, 1, 1]} : vector<2x4x18x18xbf16> to vector<2x4x16x16xbf16>
    %4 = vector.extract_strided_slice %0 {offsets = [0, 0, 1, 0], sizes = [2, 4, 16, 16], strides = [1, 1, 1, 1]} : vector<2x4x18x18xbf16> to vector<2x4x16x16xbf16>
    %5 = vector.extract_strided_slice %0 {offsets = [0, 0, 1, 1], sizes = [2, 4, 16, 16], strides = [1, 1, 1, 1]} : vector<2x4x18x18xbf16> to vector<2x4x16x16xbf16>
    %6 = vector.extract_strided_slice %0 {offsets = [0, 0, 1, 2], sizes = [2, 4, 16, 16], strides = [1, 1, 1, 1]} : vector<2x4x18x18xbf16> to vector<2x4x16x16xbf16>
    %7 = vector.extract_strided_slice %0 {offsets = [0, 0, 2, 0], sizes = [2, 4, 16, 16], strides = [1, 1, 1, 1]} : vector<2x4x18x18xbf16> to vector<2x4x16x16xbf16>
    %8 = vector.extract_strided_slice %0 {offsets = [0, 0, 2, 1], sizes = [2, 4, 16, 16], strides = [1, 1, 1, 1]} : vector<2x4x18x18xbf16> to vector<2x4x16x16xbf16>
    %9 = vector.extract_strided_slice %0 {offsets = [0, 0, 2, 2], sizes = [2, 4, 16, 16], strides = [1, 1, 1, 1]} : vector<2x4x18x18xbf16> to vector<2x4x16x16xbf16>
    %10 = tpu.concatenate %1, %2, %3, %4, %5, %6, %7, %8, %9 in 1 : vector<2x4x16x16xbf16>, vector<2x4x16x16xbf16>, vector<2x4x16x16xbf16>, vector<2x4x16x16xbf16>, vector<2x4x16x16xbf16>, vector<2x4x16x16xbf16>, vector<2x4x16x16xbf16>, vector<2x4x16x16xbf16>, vector<2x4x16x16xbf16> -> vector<2x36x16x16xbf16>
    %11 = vector.shape_cast %10 : vector<2x36x16x16xbf16> to vector<2x36x256xbf16>
    %c0_3 = arith.constant 0 : index
    %c0_4 = arith.constant 0 : index
    %12 = vector.load %arg2[%c0_3, %c0_4] : memref<8x36xbf16, #tpu.memory_space<vmem>>, vector<8x36xbf16>
    %c0_5 = arith.constant 0 : index
    %c0_6 = arith.constant 0 : index
    %13 = vector.load %arg3[%c0_5, %c0_6] : memref<8x1xf32, #tpu.memory_space<vmem>>, vector<8x1xf32>
    %14 = vector.extract_strided_slice %11 {offsets = [0, 0, 0], sizes = [1, 36, 256], strides = [1, 1, 1]} : vector<2x36x256xbf16> to vector<1x36x256xbf16>
    %15 = vector.shape_cast %14 : vector<1x36x256xbf16> to vector<36x256xbf16>
    %cst = arith.constant dense<0.000000e+00> : vector<8x256xf32>
    %16 = tpu.matmul %12, %15, %cst {dimension_numbers = #tpu.dot_dimension_numbers<[1], [0], [0], [1], [0, 0, 1, 1], [], []>} : vector<8x36xbf16>, vector<36x256xbf16>, vector<8x256xf32> -> vector<8x256xf32>
    %17 = vector.broadcast %13 : vector<8x1xf32> to vector<8x256xf32>
    %18 = arith.addf %16, %17 : vector<8x256xf32>
    %cst_7 = arith.constant 0.000000e+00 : f32
    %19 = vector.broadcast %cst_7 : f32 to vector<8x256xf32>
    %20 = arith.cmpf ogt, %18, %19 : vector<8x256xf32>
    %cst_8 = arith.constant 1.000000e-01 : f32
    %21 = vector.broadcast %cst_8 : f32 to vector<8x256xf32>
    %22 = arith.mulf %21, %18 : vector<8x256xf32>
    %23 = arith.select %20, %18, %22 : vector<8x256xi1>, vector<8x256xf32>
    %c0_9 = arith.constant 0 : index
    %c0_10 = arith.constant 0 : index
    %c0_11 = arith.constant 0 : index
    %24 = vector.load %arg4[%c0_9, %c0_10, %c0_11] : memref<2x8x256xf32, #tpu.memory_space<vmem>>, vector<1x8x256xf32>
    %25 = vector.shape_cast %24 : vector<1x8x256xf32> to vector<8x256xf32>
    %26 = vector.shape_cast %23 : vector<8x256xf32> to vector<1x8x256xf32>
    tpu.vector_store %arg4[%c0_9, %c0_10, %c0_11], %26 {strides = array<i32>} : memref<2x8x256xf32, #tpu.memory_space<vmem>>, vector<1x8x256xf32>,
    %27 = vector.extract_strided_slice %11 {offsets = [1, 0, 0], sizes = [1, 36, 256], strides = [1, 1, 1]} : vector<2x36x256xbf16> to vector<1x36x256xbf16>
    %28 = vector.shape_cast %27 : vector<1x36x256xbf16> to vector<36x256xbf16>
    %cst_12 = arith.constant dense<0.000000e+00> : vector<8x256xf32>
    %29 = tpu.matmul %12, %28, %cst_12 {dimension_numbers = #tpu.dot_dimension_numbers<[1], [0], [0], [1], [0, 0, 1, 1], [], []>} : vector<8x36xbf16>, vector<36x256xbf16>, vector<8x256xf32> -> vector<8x256xf32>
    %30 = vector.broadcast %13 : vector<8x1xf32> to vector<8x256xf32>
    %31 = arith.addf %29, %30 : vector<8x256xf32>
    %cst_13 = arith.constant 0.000000e+00 : f32
    %32 = vector.broadcast %cst_13 : f32 to vector<8x256xf32>
    %33 = arith.cmpf ogt, %31, %32 : vector<8x256xf32>
    %cst_14 = arith.constant 1.000000e-01 : f32
    %34 = vector.broadcast %cst_14 : f32 to vector<8x256xf32>
    %35 = arith.mulf %34, %31 : vector<8x256xf32>
    %36 = arith.select %33, %31, %35 : vector<8x256xi1>, vector<8x256xf32>
    %c1 = arith.constant 1 : index
    %c0_15 = arith.constant 0 : index
    %c0_16 = arith.constant 0 : index
    %37 = vector.load %arg4[%c1, %c0_15, %c0_16] : memref<2x8x256xf32, #tpu.memory_space<vmem>>, vector<1x8x256xf32>
    %38 = vector.shape_cast %37 : vector<1x8x256xf32> to vector<8x256xf32>
    %39 = vector.shape_cast %36 : vector<8x256xf32> to vector<1x8x256xf32>
    tpu.vector_store %arg4[%c1, %c0_15, %c0_16], %39 {strides = array<i32>} : memref<2x8x256xf32, #tpu.memory_space<vmem>>, vector<1x8x256xf32>,
    return
  }
  func.func @transform_0(%arg0: i32) -> (i32, i32, i32, i32) {
    %c0_i32 = arith.constant 0 : i32
    %c0_i32_0 = arith.constant 0 : i32
    %c0_i32_1 = arith.constant 0 : i32
    %c0_i32_2 = arith.constant 0 : i32
    %c0_i32_3 = arith.constant 0 : i32
    return %c0_i32, %c0_i32_0, %c0_i32_1, %c0_i32_2 : i32, i32, i32, i32
  }
  func.func @transform_1(%arg0: i32) -> (i32, i32) {
    %c0_i32 = arith.constant 0 : i32
    %c0_i32_0 = arith.constant 0 : i32
    %c0_i32_1 = arith.constant 0 : i32
    return %c0_i32, %c0_i32_0 : i32, i32
  }
  func.func @transform_2(%arg0: i32) -> (i32, i32) {
    %c0_i32 = arith.constant 0 : i32
    %c0_i32_0 = arith.constant 0 : i32
    %c0_i32_1 = arith.constant 0 : i32
    return %c0_i32, %c0_i32_0 : i32, i32
  }
  func.func @transform_3(%arg0: i32) -> (i32, i32, i32) {
    %c0_i32 = arith.constant 0 : i32
    %c0_i32_0 = arith.constant 0 : i32
    %c0_i32_1 = arith.constant 0 : i32
    %c0_i32_2 = arith.constant 0 : i32
    return %c0_i32, %c0_i32_0, %c0_i32_1 : i32, i32, i32
  }
}

</mosaic_0001>

<llo_original>
// kernel: tpu_custom_call.1
$region0: #{tpu_custom_call.1}
  #allocation0 [shape = 'u32[]', space=smem, size = 0x4, offset = 0x4, fixed_abs, tag = 'smem constant byte address 0x4 - core index']
  #allocation1 [shape = 'u32[144,128]{1,0:T(1,128)}', space=vmem, size = 0x12000, scoped, tag = 'internal scratch']
  %s0 = inlined_call_operand.vmem [shape: bf16[2,4,18,18], index: 0, kind: input, shape index: {}]
  %s1 = inlined_call_operand.vmem [shape: bf16[8,36], index: 1, kind: input, shape index: {}]
  %s2 = inlined_call_operand.vmem [shape: f32[8,1], index: 2, kind: input, shape index: {}]
  %s3 = inlined_call_operand.hbm [shape: f32[2,8,256], index: 3, kind: output, shape index: {}]
  %s4 = sld [smem:[#allocation0]]
  $region22: #{tpu_custom_call.1} parent=0
    _
  %s6 = ssub.s32 1, %s4
  %s7 = scalar_select 0, %s6, %s4
  $region1: #{tpu_custom_call.1} parent=0
    #allocation2 [shape = 'u8[16384]{0}', space=vmem, size = 0x4000, scoped, tag = 'output window, operand 0, single buffered']
    #allocation3 [shape = 's32[1]{0}', space=sflag, size = 0x4, scoped, tag = 'scoped memory for tpu_custom_call.1']
    %8 = vsyncpa [#allocation3], 0
    // Predicated region
    $region2: #{tpu_custom_call.1} parent=1 // pred_check
      _
    $region3: #{tpu_custom_call.1} parent=1 // pred_check_branch
      %10 = sbr.rel (0) target = $region5
    $region4: #{tpu_custom_call.1} parent=1 // pred_region
      _
    $region5: #{tpu_custom_call.1} parent=1 // pred_fallthru
      _
    // Predicated region
    $region6: #{tpu_custom_call.1} parent=1 // pred_check
      _
    $region7: #{tpu_custom_call.1} parent=1 // pred_check_branch
      %12 = sbr.rel (0) target = $region9
    $region8: #{tpu_custom_call.1} parent=1 // pred_region
      _
    $region9: #{tpu_custom_call.1} parent=1 // pred_fallthru
      _
    // Predicated region
    $region10: #{tpu_custom_call.1} parent=1 // pred_check
      _
    $region11: #{tpu_custom_call.1} parent=1 // pred_check_branch
      %14 = sbr.rel (0) target = $region13
    $region12: #{tpu_custom_call.1} parent=1 // pred_region
      _
    $region13: #{tpu_custom_call.1} parent=1 // pred_fallthru
      _
    %v16 = vld [vmem:[%s0] sm:$0xf]
    %v17 = vld [vmem:[%s0 + $0x4] sm:$0xf]
    %v18 = vld [vmem:[%s0 + $0x8] sm:$0x1]
    %v19 = vld [vmem:[%s0 + $0xc] sm:$0xf]
    %v20 = vld [vmem:[%s0 + $0x10] sm:$0xf]
    %v21 = vld [vmem:[%s0 + $0x14] sm:$0x1]
    %v22 = vld [vmem:[%s0 + $0x18] sm:$0xf]
    %v23 = vld [vmem:[%s0 + $0x1c] sm:$0xf]
    %v24 = vld [vmem:[%s0 + $0x20] sm:$0x1]
    %v25 = vld [vmem:[%s0 + $0x24] sm:$0xf]
    %v26 = vld [vmem:[%s0 + $0x28] sm:$0xf]
    %v27 = vld [vmem:[%s0 + $0x2c] sm:$0x1]
    %v28 = vld [vmem:[%s0 + $0x30] sm:$0xf]
    %v29 = vld [vmem:[%s0 + $0x34] sm:$0xf]
    %v30 = vld [vmem:[%s0 + $0x38] sm:$0x1]
    %v31 = vld [vmem:[%s0 + $0x3c] sm:$0xf]
    %v32 = vld [vmem:[%s0 + $0x40] sm:$0xf]
    %v33 = vld [vmem:[%s0 + $0x44] sm:$0x1]
    %v34 = vld [vmem:[%s0 + $0x48] sm:$0xf]
    %v35 = vld [vmem:[%s0 + $0x4c] sm:$0xf]
    %v36 = vld [vmem:[%s0 + $0x50] sm:$0x1]
    %v37 = vld [vmem:[%s0 + $0x54] sm:$0xf]
    %v38 = vld [vmem:[%s0 + $0x58] sm:$0xf]
    %v39 = vld [vmem:[%s0 + $0x5c] sm:$0x1]
    %56 = vrot.lane.b32.xlu0 %v16, 127
    %v57 = vpop.permute.xlu0 %56
    %58 = vrot.lane.b32.xlu0 %v17, 127
    %v59 = vpop.permute.xlu0 %58
    %60 = vrot.lane.b32.xlu0 %v19, 127
    %v61 = vpop.permute.xlu0 %60
    %62 = vrot.lane.b32.xlu0 %v20, 127
    %v63 = vpop.permute.xlu0 %62
    %64 = vrot.lane.b32.xlu0 %v22, 127
    %v65 = vpop.permute.xlu0 %64
    %66 = vrot.lane.b32.xlu0 %v23, 127
    %v67 = vpop.permute.xlu0 %66
    %68 = vrot.lane.b32.xlu0 %v25, 127
    %v69 = vpop.permute.xlu0 %68
    %70 = vrot.lane.b32.xlu0 %v26, 127
    %v71 = vpop.permute.xlu0 %70
    %72 = vrot.lane.b32.xlu0 %v28, 127
    %v73 = vpop.permute.xlu0 %72
    %74 = vrot.lane.b32.xlu0 %v29, 127
    %v75 = vpop.permute.xlu0 %74
    %76 = vrot.lane.b32.xlu0 %v31, 127
    %v77 = vpop.permute.xlu0 %76
    %78 = vrot.lane.b32.xlu0 %v32, 127
    %v79 = vpop.permute.xlu0 %78
    %80 = vrot.lane.b32.xlu0 %v34, 127
    %v81 = vpop.permute.xlu0 %80
    %82 = vrot.lane.b32.xlu0 %v35, 127
    %v83 = vpop.permute.xlu0 %82
    %84 = vrot.lane.b32.xlu0 %v37, 127
    %v85 = vpop.permute.xlu0 %84
    %86 = vrot.lane.b32.xlu0 %v38, 127
    %v87 = vpop.permute.xlu0 %86
    %88 = vrot.lane.b32.xlu0 %v16, 126
    %v89 = vpop.permute.xlu0 %88
    %90 = vrot.lane.b32.xlu0 %v17, 126
    %v91 = vpop.permute.xlu0 %90
    %92 = vrot.lane.b32.xlu0 %v19, 126
    %v93 = vpop.permute.xlu0 %92
    %94 = vrot.lane.b32.xlu0 %v20, 126
    %v95 = vpop.permute.xlu0 %94
    %96 = vrot.lane.b32.xlu0 %v22, 126
    %v97 = vpop.permute.xlu0 %96
    %98 = vrot.lane.b32.xlu0 %v23, 126
    %v99 = vpop.permute.xlu0 %98
    %100 = vrot.lane.b32.xlu0 %v25, 126
    %v101 = vpop.permute.xlu0 %100
    %102 = vrot.lane.b32.xlu0 %v26, 126
    %v103 = vpop.permute.xlu0 %102
    %104 = vrot.lane.b32.xlu0 %v28, 126
    %v105 = vpop.permute.xlu0 %104
    %106 = vrot.lane.b32.xlu0 %v29, 126
    %v107 = vpop.permute.xlu0 %106
    %108 = vrot.lane.b32.xlu0 %v31, 126
    %v109 = vpop.permute.xlu0 %108
    %110 = vrot.lane.b32.xlu0 %v32, 126
    %v111 = vpop.permute.xlu0 %110
    %112 = vrot.lane.b32.xlu0 %v34, 126
    %v113 = vpop.permute.xlu0 %112
    %114 = vrot.lane.b32.xlu0 %v35, 126
    %v115 = vpop.permute.xlu0 %114
    %116 = vrot.lane.b32.xlu0 %v37, 126
    %v117 = vpop.permute.xlu0 %116
    %118 = vrot.lane.b32.xlu0 %v38, 126
    %v119 = vpop.permute.xlu0 %118
    %vm120 = vsmask.f32 3328
    %vm121 = vsmask.f32 7440
    %vm122 = vmor %vm120, %vm121
    %v124 = vshrl.u32 %v16, 16
    %v126 = vrot.slane %v124, 4
    %v127 = vshll.u32 %v16, 16
    %v129 = vrot.slane %v127, 5
    %v130 = vor.u32 %v126, %v129
    %v131 = vrot.slane %v130, 4
    %v133 = vshll.u32 %v17, 16
    %v135 = vrot.slane %v133, 5
    %v136 = vsel %vm122, %v131, %v135
    %v137 = vshrl.u32 %v17, 16
    %v139 = vrot.slane %v137, 4
    %v140 = vor.u32 %v139, %v135
    %v141 = vrot.slane %v140, 4
    %v143 = vshll.u32 %v18, 16
    %v145 = vrot.slane %v143, 5
    %v146 = vsel %vm122, %v141, %v145
    %v148 = vshrl.u32 %v19, 16
    %v150 = vrot.slane %v148, 4
    %v151 = vshll.u32 %v19, 16
    %v153 = vrot.slane %v151, 5
    %v154 = vor.u32 %v150, %v153
    %v155 = vrot.slane %v154, 4
    %v157 = vshll.u32 %v20, 16
    %v159 = vrot.slane %v157, 5
    %v160 = vsel %vm122, %v155, %v159
    %v161 = vshrl.u32 %v20, 16
    %v163 = vrot.slane %v161, 4
    %v164 = vor.u32 %v163, %v159
    %v165 = vrot.slane %v164, 4
    %v167 = vshll.u32 %v21, 16
    %v169 = vrot.slane %v167, 5
    %v170 = vsel %vm122, %v165, %v169
    %v172 = vshrl.u32 %v22, 16
    %v174 = vrot.slane %v172, 4
    %v175 = vshll.u32 %v22, 16
    %v177 = vrot.slane %v175, 5
    %v178 = vor.u32 %v174, %v177
    %v179 = vrot.slane %v178, 4
    %v181 = vshll.u32 %v23, 16
    %v183 = vrot.slane %v181, 5
    %v184 = vsel %vm122, %v179, %v183
    %v185 = vshrl.u32 %v23, 16
    %v187 = vrot.slane %v185, 4
    %v188 = vor.u32 %v187, %v183
    %v189 = vrot.slane %v188, 4
    %v191 = vshll.u32 %v24, 16
    %v193 = vrot.slane %v191, 5
    %v194 = vsel %vm122, %v189, %v193
    %v196 = vshrl.u32 %v25, 16
    %v198 = vrot.slane %v196, 4
    %v199 = vshll.u32 %v25, 16
    %v201 = vrot.slane %v199, 5
    %v202 = vor.u32 %v198, %v201
    %v203 = vrot.slane %v202, 4
    %v205 = vshll.u32 %v26, 16
    %v207 = vrot.slane %v205, 5
    %v208 = vsel %vm122, %v203, %v207
    %v209 = vshrl.u32 %v26, 16
    %v211 = vrot.slane %v209, 4
    %v212 = vor.u32 %v211, %v207
    %v213 = vrot.slane %v212, 4
    %v215 = vshll.u32 %v27, 16
    %v217 = vrot.slane %v215, 5
    %v218 = vsel %vm122, %v213, %v217
    %v220 = vshrl.u32 %v28, 16
    %v222 = vrot.slane %v220, 4
    %v223 = vshll.u32 %v28, 16
    %v225 = vrot.slane %v223, 5
    %v226 = vor.u32 %v222, %v225
    %v227 = vrot.slane %v226, 4
    %v229 = vshll.u32 %v29, 16
    %v231 = vrot.slane %v229, 5
    %v232 = vsel %vm122, %v227, %v231
    %v233 = vshrl.u32 %v29, 16
    %v235 = vrot.slane %v233, 4
    %v236 = vor.u32 %v235, %v231
    %v237 = vrot.slane %v236, 4
    %v239 = vshll.u32 %v30, 16
    %v241 = vrot.slane %v239, 5
    %v242 = vsel %vm122, %v237, %v241
    %v244 = vshrl.u32 %v31, 16
    %v246 = vrot.slane %v244, 4
    %v247 = vshll.u32 %v31, 16
    %v249 = vrot.slane %v247, 5
    %v250 = vor.u32 %v246, %v249
    %v251 = vrot.slane %v250, 4
    %v253 = vshll.u32 %v32, 16
    %v255 = vrot.slane %v253, 5
    %v256 = vsel %vm122, %v251, %v255
    %v257 = vshrl.u32 %v32, 16
    %v259 = vrot.slane %v257, 4
    %v260 = vor.u32 %v259, %v255
    %v261 = vrot.slane %v260, 4
    %v263 = vshll.u32 %v33, 16
    %v265 = vrot.slane %v263, 5
    %v266 = vsel %vm122, %v261, %v265
    %v268 = vshrl.u32 %v34, 16
    %v270 = vrot.slane %v268, 4
    %v271 = vshll.u32 %v34, 16
    %v273 = vrot.slane %v271, 5
    %v274 = vor.u32 %v270, %v273
    %v275 = vrot.slane %v274, 4
    %v277 = vshll.u32 %v35, 16
    %v279 = vrot.slane %v277, 5
    %v280 = vsel %vm122, %v275, %v279
    %v281 = vshrl.u32 %v35, 16
    %v283 = vrot.slane %v281, 4
    %v284 = vor.u32 %v283, %v279
    %v285 = vrot.slane %v284, 4
    %v287 = vshll.u32 %v36, 16
    %v289 = vrot.slane %v287, 5
    %v290 = vsel %vm122, %v285, %v289
    %v292 = vshrl.u32 %v37, 16
    %v294 = vrot.slane %v292, 4
    %v295 = vshll.u32 %v37, 16
    %v297 = vrot.slane %v295, 5
    %v298 = vor.u32 %v294, %v297
    %v299 = vrot.slane %v298, 4
    %v301 = vshll.u32 %v38, 16
    %v303 = vrot.slane %v301, 5
    %v304 = vsel %vm122, %v299, %v303
    %v305 = vshrl.u32 %v38, 16
    %v307 = vrot.slane %v305, 4
    %v308 = vor.u32 %v307, %v303
    %v309 = vrot.slane %v308, 4
    %v311 = vshll.u32 %v39, 16
    %v313 = vrot.slane %v311, 5
    %v314 = vsel %vm122, %v309, %v313
    %315 = vrot.lane.b32.xlu0 %v136, 127
    %v316 = vpop.permute.xlu0 %315
    %317 = vrot.lane.b32.xlu0 %v146, 127
    %v318 = vpop.permute.xlu0 %317
    %319 = vrot.lane.b32.xlu0 %v160, 127
    %v320 = vpop.permute.xlu0 %319
    %321 = vrot.lane.b32.xlu0 %v170, 127
    %v322 = vpop.permute.xlu0 %321
    %323 = vrot.lane.b32.xlu0 %v184, 127
    %v324 = vpop.permute.xlu0 %323
    %325 = vrot.lane.b32.xlu0 %v194, 127
    %v326 = vpop.permute.xlu0 %325
    %327 = vrot.lane.b32.xlu0 %v208, 127
    %v328 = vpop.permute.xlu0 %327
    %329 = vrot.lane.b32.xlu0 %v218, 127
    %v330 = vpop.permute.xlu0 %329
    %331 = vrot.lane.b32.xlu0 %v232, 127
    %v332 = vpop.permute.xlu0 %331
    %333 = vrot.lane.b32.xlu0 %v242, 127
    %v334 = vpop.permute.xlu0 %333
    %335 = vrot.lane.b32.xlu0 %v256, 127
    %v336 = vpop.permute.xlu0 %335
    %337 = vrot.lane.b32.xlu0 %v266, 127
    %v338 = vpop.permute.xlu0 %337
    %339 = vrot.lane.b32.xlu0 %v280, 127
    %v340 = vpop.permute.xlu0 %339
    %341 = vrot.lane.b32.xlu0 %v290, 127
    %v342 = vpop.permute.xlu0 %341
    %343 = vrot.lane.b32.xlu0 %v304, 127
    %v344 = vpop.permute.xlu0 %343
    %345 = vrot.lane.b32.xlu0 %v314, 127
    %v346 = vpop.permute.xlu0 %345
    %347 = vrot.lane.b32.xlu0 %v136, 126
    %v348 = vpop.permute.xlu0 %347
    %349 = vrot.lane.b32.xlu0 %v146, 126
    %v350 = vpop.permute.xlu0 %349
    %351 = vrot.lane.b32.xlu0 %v160, 126
    %v352 = vpop.permute.xlu0 %351
    %353 = vrot.lane.b32.xlu0 %v170, 126
    %v354 = vpop.permute.xlu0 %353
    %355 = vrot.lane.b32.xlu0 %v184, 126
    %v356 = vpop.permute.xlu0 %355
    %357 = vrot.lane.b32.xlu0 %v194, 126
    %v358 = vpop.permute.xlu0 %357
    %359 = vrot.lane.b32.xlu0 %v208, 126
    %v360 = vpop.permute.xlu0 %359
    %361 = vrot.lane.b32.xlu0 %v218, 126
    %v362 = vpop.permute.xlu0 %361
    %363 = vrot.lane.b32.xlu0 %v232, 126
    %v364 = vpop.permute.xlu0 %363
    %365 = vrot.lane.b32.xlu0 %v242, 126
    %v366 = vpop.permute.xlu0 %365
    %367 = vrot.lane.b32.xlu0 %v256, 126
    %v368 = vpop.permute.xlu0 %367
    %369 = vrot.lane.b32.xlu0 %v266, 126
    %v370 = vpop.permute.xlu0 %369
    %371 = vrot.lane.b32.xlu0 %v280, 126
    %v372 = vpop.permute.xlu0 %371
    %373 = vrot.lane.b32.xlu0 %v290, 126
    %v374 = vpop.permute.xlu0 %373
    %375 = vrot.lane.b32.xlu0 %v304, 126
    %v376 = vpop.permute.xlu0 %375
    %377 = vrot.lane.b32.xlu0 %v314, 126
    %v378 = vpop.permute.xlu0 %377
    %vm387 = vcmask 1042432
    %vm388 = vcmask 1046532
    %vm389 = vmor %vm387, %vm388
    %v390 = vrot.slane %v16, 5
    %v391 = vrot.slane %v390, 4
    %v392 = vrot.slane %v17, 5
    %v393 = vsel %vm389, %v391, %v392
    %v394 = vrot.slane %v392, 4
    %v395 = vrot.slane %v18, 5
    %v396 = vsel %vm389, %v394, %v395
    %v397 = vrot.slane %v19, 5
    %v398 = vrot.slane %v397, 4
    %v399 = vrot.slane %v20, 5
    %v400 = vsel %vm389, %v398, %v399
    %v401 = vrot.slane %v399, 4
    %v402 = vrot.slane %v21, 5
    %v403 = vsel %vm389, %v401, %v402
    %v404 = vrot.slane %v22, 5
    %v405 = vrot.slane %v404, 4
    %v406 = vrot.slane %v23, 5
    %v407 = vsel %vm389, %v405, %v406
    %v408 = vrot.slane %v406, 4
    %v409 = vrot.slane %v24, 5
    %v410 = vsel %vm389, %v408, %v409
    %v411 = vrot.slane %v25, 5
    %v412 = vrot.slane %v411, 4
    %v413 = vrot.slane %v26, 5
    %v414 = vsel %vm389, %v412, %v413
    %v415 = vrot.slane %v413, 4
    %v416 = vrot.slane %v27, 5
    %v417 = vsel %vm389, %v415, %v416
    %v418 = vrot.slane %v28, 5
    %v419 = vrot.slane %v418, 4
    %v420 = vrot.slane %v29, 5
    %v421 = vsel %vm389, %v419, %v420
    %v422 = vrot.slane %v420, 4
    %v423 = vrot.slane %v30, 5
    %v424 = vsel %vm389, %v422, %v423
    %v425 = vrot.slane %v31, 5
    %v426 = vrot.slane %v425, 4
    %v427 = vrot.slane %v32, 5
    %v428 = vsel %vm389, %v426, %v427
    %v429 = vrot.slane %v427, 4
    %v430 = vrot.slane %v33, 5
    %v431 = vsel %vm389, %v429, %v430
    %v432 = vrot.slane %v34, 5
    %v433 = vrot.slane %v432, 4
    %v434 = vrot.slane %v35, 5
    %v435 = vsel %vm389, %v433, %v434
    %v436 = vrot.slane %v434, 4
    %v437 = vrot.slane %v36, 5
    %v438 = vsel %vm389, %v436, %v437
    %v439 = vrot.slane %v37, 5
    %v440 = vrot.slane %v439, 4
    %v441 = vrot.slane %v38, 5
    %v442 = vsel %vm389, %v440, %v441
    %v443 = vrot.slane %v441, 4
    %v444 = vrot.slane %v39, 5
    %v445 = vsel %vm389, %v443, %v444
    %446 = vrot.lane.b32.xlu0 %v393, 127
    %v447 = vpop.permute.xlu0 %446
    %448 = vrot.lane.b32.xlu0 %v396, 127
    %v449 = vpop.permute.xlu0 %448
    %450 = vrot.lane.b32.xlu0 %v400, 127
    %v451 = vpop.permute.xlu0 %450
    %452 = vrot.lane.b32.xlu0 %v403, 127
    %v453 = vpop.permute.xlu0 %452
    %454 = vrot.lane.b32.xlu0 %v407, 127
    %v455 = vpop.permute.xlu0 %454
    %456 = vrot.lane.b32.xlu0 %v410, 127
    %v457 = vpop.permute.xlu0 %456
    %458 = vrot.lane.b32.xlu0 %v414, 127
    %v459 = vpop.permute.xlu0 %458
    %460 = vrot.lane.b32.xlu0 %v417, 127
    %v461 = vpop.permute.xlu0 %460
    %462 = vrot.lane.b32.xlu0 %v421, 127
    %v463 = vpop.permute.xlu0 %462
    %464 = vrot.lane.b32.xlu0 %v424, 127
    %v465 = vpop.permute.xlu0 %464
    %466 = vrot.lane.b32.xlu0 %v428, 127
    %v467 = vpop.permute.xlu0 %466
    %468 = vrot.lane.b32.xlu0 %v431, 127
    %v469 = vpop.permute.xlu0 %468
    %470 = vrot.lane.b32.xlu0 %v435, 127
    %v471 = vpop.permute.xlu0 %470
    %472 = vrot.lane.b32.xlu0 %v438, 127
    %v473 = vpop.permute.xlu0 %472
    %474 = vrot.lane.b32.xlu0 %v442, 127
    %v475 = vpop.permute.xlu0 %474
    %476 = vrot.lane.b32.xlu0 %v445, 127
    %v477 = vpop.permute.xlu0 %476
    %478 = vrot.lane.b32.xlu0 %v393, 126
    %v479 = vpop.permute.xlu0 %478
    %480 = vrot.lane.b32.xlu0 %v396, 126
    %v481 = vpop.permute.xlu0 %480
    %482 = vrot.lane.b32.xlu0 %v400, 126
    %v483 = vpop.permute.xlu0 %482
    %484 = vrot.lane.b32.xlu0 %v403, 126
    %v485 = vpop.permute.xlu0 %484
    %486 = vrot.lane.b32.xlu0 %v407, 126
    %v487 = vpop.permute.xlu0 %486
    %488 = vrot.lane.b32.xlu0 %v410, 126
    %v489 = vpop.permute.xlu0 %488
    %490 = vrot.lane.b32.xlu0 %v414, 126
    %v491 = vpop.permute.xlu0 %490
    %492 = vrot.lane.b32.xlu0 %v417, 126
    %v493 = vpop.permute.xlu0 %492
    %494 = vrot.lane.b32.xlu0 %v421, 126
    %v495 = vpop.permute.xlu0 %494
    %496 = vrot.lane.b32.xlu0 %v424, 126
    %v497 = vpop.permute.xlu0 %496
    %498 = vrot.lane.b32.xlu0 %v428, 126
    %v499 = vpop.permute.xlu0 %498
    %500 = vrot.lane.b32.xlu0 %v431, 126
    %v501 = vpop.permute.xlu0 %500
    %502 = vrot.lane.b32.xlu0 %v435, 126
    %v503 = vpop.permute.xlu0 %502
    %504 = vrot.lane.b32.xlu0 %v438, 126
    %v505 = vpop.permute.xlu0 %504
    %506 = vrot.lane.b32.xlu0 %v442, 126
    %v507 = vpop.permute.xlu0 %506
    %508 = vrot.lane.b32.xlu0 %v445, 126
    %v509 = vpop.permute.xlu0 %508
    %v510 = vpack.i.b16 %v19, %v16
    %v512 = vpack.i.b16 %v148, %v124
    %v514 = vpack.i.b16 %v25, %v22
    %v516 = vpack.i.b16 %v196, %v172
    %v520 = vpack.i.b16 %v61, %v57
    %v522 = vshrl.u32 %v57, 16
    %v523 = vshrl.u32 %v61, 16
    %v524 = vpack.i.b16 %v523, %v522
    %v528 = vpack.i.b16 %v69, %v65
    %v530 = vshrl.u32 %v65, 16
    %v531 = vshrl.u32 %v69, 16
    %v532 = vpack.i.b16 %v531, %v530
    %v536 = vpack.i.b16 %v93, %v89
    %v538 = vshrl.u32 %v89, 16
    %v539 = vshrl.u32 %v93, 16
    %v540 = vpack.i.b16 %v539, %v538
    %v544 = vpack.i.b16 %v101, %v97
    %v546 = vshrl.u32 %v97, 16
    %v547 = vshrl.u32 %v101, 16
    %v548 = vpack.i.b16 %v547, %v546
    %v552 = vpack.i.b16 %v160, %v136
    %v554 = vshrl.u32 %v136, 16
    %v555 = vshrl.u32 %v160, 16
    %v556 = vpack.i.b16 %v555, %v554
    %v560 = vpack.i.b16 %v208, %v184
    %v562 = vshrl.u32 %v184, 16
    %v563 = vshrl.u32 %v208, 16
    %v564 = vpack.i.b16 %v563, %v562
    %v568 = vpack.i.b16 %v320, %v316
    %v570 = vshrl.u32 %v316, 16
    %v571 = vshrl.u32 %v320, 16
    %v572 = vpack.i.b16 %v571, %v570
    %v576 = vpack.i.b16 %v328, %v324
    %v578 = vshrl.u32 %v324, 16
    %v579 = vshrl.u32 %v328, 16
    %v580 = vpack.i.b16 %v579, %v578
    %v584 = vpack.i.b16 %v352, %v348
    %v586 = vshrl.u32 %v348, 16
    %v587 = vshrl.u32 %v352, 16
    %v588 = vpack.i.b16 %v587, %v586
    %v592 = vpack.i.b16 %v360, %v356
    %v594 = vshrl.u32 %v356, 16
    %v595 = vshrl.u32 %v360, 16
    %v596 = vpack.i.b16 %v595, %v594
    %v600 = vpack.i.b16 %v400, %v393
    %v602 = vshrl.u32 %v393, 16
    %v603 = vshrl.u32 %v400, 16
    %v604 = vpack.i.b16 %v603, %v602
    %v608 = vpack.i.b16 %v414, %v407
    %v610 = vshrl.u32 %v407, 16
    %v611 = vshrl.u32 %v414, 16
    %v612 = vpack.i.b16 %v611, %v610
    %v616 = vpack.i.b16 %v451, %v447
    %v618 = vshrl.u32 %v447, 16
    %v619 = vshrl.u32 %v451, 16
    %v620 = vpack.i.b16 %v619, %v618
    %v624 = vpack.i.b16 %v459, %v455
    %v626 = vshrl.u32 %v455, 16
    %v627 = vshrl.u32 %v459, 16
    %v628 = vpack.i.b16 %v627, %v626
    %v632 = vpack.i.b16 %v483, %v479
    %v633 = vshrl.u32 %v479, 16
    %v634 = vshrl.u32 %v483, 16
    %v635 = vpack.i.b16 %v634, %v633
    %v638 = vpack.i.b16 %v491, %v487
    %v639 = vshrl.u32 %v487, 16
    %v640 = vshrl.u32 %v491, 16
    %v641 = vpack.i.b16 %v640, %v639
    %v642 = vpack.i.b16 %v20, %v17
    %v644 = vpack.i.b16 %v161, %v137
    %v646 = vpack.i.b16 %v26, %v23
    %v648 = vpack.i.b16 %v209, %v185
    %v652 = vpack.i.b16 %v63, %v59
    %v654 = vshrl.u32 %v59, 16
    %v655 = vshrl.u32 %v63, 16
    %v656 = vpack.i.b16 %v655, %v654
    %v660 = vpack.i.b16 %v71, %v67
    %v662 = vshrl.u32 %v67, 16
    %v663 = vshrl.u32 %v71, 16
    %v664 = vpack.i.b16 %v663, %v662
    %v668 = vpack.i.b16 %v95, %v91
    %v670 = vshrl.u32 %v91, 16
    %v671 = vshrl.u32 %v95, 16
    %v672 = vpack.i.b16 %v671, %v670
    %v676 = vpack.i.b16 %v103, %v99
    %v678 = vshrl.u32 %v99, 16
    %v679 = vshrl.u32 %v103, 16
    %v680 = vpack.i.b16 %v679, %v678
    %v684 = vpack.i.b16 %v170, %v146
    %v686 = vshrl.u32 %v146, 16
    %v687 = vshrl.u32 %v170, 16
    %v688 = vpack.i.b16 %v687, %v686
    %v692 = vpack.i.b16 %v218, %v194
    %v694 = vshrl.u32 %v194, 16
    %v695 = vshrl.u32 %v218, 16
    %v696 = vpack.i.b16 %v695, %v694
    %v700 = vpack.i.b16 %v322, %v318
    %v702 = vshrl.u32 %v318, 16
    %v703 = vshrl.u32 %v322, 16
    %v704 = vpack.i.b16 %v703, %v702
    %v708 = vpack.i.b16 %v330, %v326
    %v710 = vshrl.u32 %v326, 16
    %v711 = vshrl.u32 %v330, 16
    %v712 = vpack.i.b16 %v711, %v710
    %v716 = vpack.i.b16 %v354, %v350
    %v718 = vshrl.u32 %v350, 16
    %v719 = vshrl.u32 %v354, 16
    %v720 = vpack.i.b16 %v719, %v718
    %v724 = vpack.i.b16 %v362, %v358
    %v726 = vshrl.u32 %v358, 16
    %v727 = vshrl.u32 %v362, 16
    %v728 = vpack.i.b16 %v727, %v726
    %v732 = vpack.i.b16 %v403, %v396
    %v734 = vshrl.u32 %v396, 16
    %v735 = vshrl.u32 %v403, 16
    %v736 = vpack.i.b16 %v735, %v734
    %v740 = vpack.i.b16 %v417, %v410
    %v742 = vshrl.u32 %v410, 16
    %v743 = vshrl.u32 %v417, 16
    %v744 = vpack.i.b16 %v743, %v742
    %v748 = vpack.i.b16 %v453, %v449
    %v750 = vshrl.u32 %v449, 16
    %v751 = vshrl.u32 %v453, 16
    %v752 = vpack.i.b16 %v751, %v750
    %v756 = vpack.i.b16 %v461, %v457
    %v758 = vshrl.u32 %v457, 16
    %v759 = vshrl.u32 %v461, 16
    %v760 = vpack.i.b16 %v759, %v758
    %v764 = vpack.i.b16 %v485, %v481
    %v765 = vshrl.u32 %v481, 16
    %v766 = vshrl.u32 %v485, 16
    %v767 = vpack.i.b16 %v766, %v765
    %v770 = vpack.i.b16 %v493, %v489
    %v771 = vshrl.u32 %v489, 16
    %v772 = vshrl.u32 %v493, 16
    %v773 = vpack.i.b16 %v772, %v771
    %v774 = vpack.i.b16 %v31, %v28
    %v776 = vpack.i.b16 %v244, %v220
    %v778 = vpack.i.b16 %v37, %v34
    %v780 = vpack.i.b16 %v292, %v268
    %v784 = vpack.i.b16 %v77, %v73
    %v786 = vshrl.u32 %v73, 16
    %v787 = vshrl.u32 %v77, 16
    %v788 = vpack.i.b16 %v787, %v786
    %v792 = vpack.i.b16 %v85, %v81
    %v794 = vshrl.u32 %v81, 16
    %v795 = vshrl.u32 %v85, 16
    %v796 = vpack.i.b16 %v795, %v794
    %v800 = vpack.i.b16 %v109, %v105
    %v802 = vshrl.u32 %v105, 16
    %v803 = vshrl.u32 %v109, 16
    %v804 = vpack.i.b16 %v803, %v802
    %v808 = vpack.i.b16 %v117, %v113
    %v810 = vshrl.u32 %v113, 16
    %v811 = vshrl.u32 %v117, 16
    %v812 = vpack.i.b16 %v811, %v810
    %v816 = vpack.i.b16 %v256, %v232
    %v818 = vshrl.u32 %v232, 16
    %v819 = vshrl.u32 %v256, 16
    %v820 = vpack.i.b16 %v819, %v818
    %v824 = vpack.i.b16 %v304, %v280
    %v826 = vshrl.u32 %v280, 16
    %v827 = vshrl.u32 %v304, 16
    %v828 = vpack.i.b16 %v827, %v826
    %v832 = vpack.i.b16 %v336, %v332
    %v834 = vshrl.u32 %v332, 16
    %v835 = vshrl.u32 %v336, 16
    %v836 = vpack.i.b16 %v835, %v834
    %v840 = vpack.i.b16 %v344, %v340
    %v842 = vshrl.u32 %v340, 16
    %v843 = vshrl.u32 %v344, 16
    %v844 = vpack.i.b16 %v843, %v842
    %v848 = vpack.i.b16 %v368, %v364
    %v850 = vshrl.u32 %v364, 16
    %v851 = vshrl.u32 %v368, 16
    %v852 = vpack.i.b16 %v851, %v850
    %v856 = vpack.i.b16 %v376, %v372
    %v858 = vshrl.u32 %v372, 16
    %v859 = vshrl.u32 %v376, 16
    %v860 = vpack.i.b16 %v859, %v858
    %v864 = vpack.i.b16 %v428, %v421
    %v866 = vshrl.u32 %v421, 16
    %v867 = vshrl.u32 %v428, 16
    %v868 = vpack.i.b16 %v867, %v866
    %v872 = vpack.i.b16 %v442, %v435
    %v874 = vshrl.u32 %v435, 16
    %v875 = vshrl.u32 %v442, 16
    %v876 = vpack.i.b16 %v875, %v874
    %v880 = vpack.i.b16 %v467, %v463
    %v882 = vshrl.u32 %v463, 16
    %v883 = vshrl.u32 %v467, 16
    %v884 = vpack.i.b16 %v883, %v882
    %v888 = vpack.i.b16 %v475, %v471
    %v890 = vshrl.u32 %v471, 16
    %v891 = vshrl.u32 %v475, 16
    %v892 = vpack.i.b16 %v891, %v890
    %v896 = vpack.i.b16 %v499, %v495
    %v897 = vshrl.u32 %v495, 16
    %v898 = vshrl.u32 %v499, 16
    %v899 = vpack.i.b16 %v898, %v897
    %v902 = vpack.i.b16 %v507, %v503
    %v903 = vshrl.u32 %v503, 16
    %v904 = vshrl.u32 %v507, 16
    %v905 = vpack.i.b16 %v904, %v903
    %v906 = vpack.i.b16 %v32, %v29
    %v908 = vpack.i.b16 %v257, %v233
    %v910 = vpack.i.b16 %v38, %v35
    %v912 = vpack.i.b16 %v305, %v281
    %v916 = vpack.i.b16 %v79, %v75
    %v918 = vshrl.u32 %v75, 16
    %v919 = vshrl.u32 %v79, 16
    %v920 = vpack.i.b16 %v919, %v918
    %v924 = vpack.i.b16 %v87, %v83
    %v926 = vshrl.u32 %v83, 16
    %v927 = vshrl.u32 %v87, 16
    %v928 = vpack.i.b16 %v927, %v926
    %v932 = vpack.i.b16 %v111, %v107
    %v934 = vshrl.u32 %v107, 16
    %v935 = vshrl.u32 %v111, 16
    %v936 = vpack.i.b16 %v935, %v934
    %v940 = vpack.i.b16 %v119, %v115
    %v942 = vshrl.u32 %v115, 16
    %v943 = vshrl.u32 %v119, 16
    %v944 = vpack.i.b16 %v943, %v942
    %v948 = vpack.i.b16 %v266, %v242
    %v950 = vshrl.u32 %v242, 16
    %v951 = vshrl.u32 %v266, 16
    %v952 = vpack.i.b16 %v951, %v950
    %v956 = vpack.i.b16 %v314, %v290
    %v958 = vshrl.u32 %v290, 16
    %v959 = vshrl.u32 %v314, 16
    %v960 = vpack.i.b16 %v959, %v958
    %v964 = vpack.i.b16 %v338, %v334
    %v966 = vshrl.u32 %v334, 16
    %v967 = vshrl.u32 %v338, 16
    %v968 = vpack.i.b16 %v967, %v966
    %v972 = vpack.i.b16 %v346, %v342
    %v974 = vshrl.u32 %v342, 16
    %v975 = vshrl.u32 %v346, 16
    %v976 = vpack.i.b16 %v975, %v974
    %v980 = vpack.i.b16 %v370, %v366
    %v982 = vshrl.u32 %v366, 16
    %v983 = vshrl.u32 %v370, 16
    %v984 = vpack.i.b16 %v983, %v982
    %v988 = vpack.i.b16 %v378, %v374
    %v990 = vshrl.u32 %v374, 16
    %v991 = vshrl.u32 %v378, 16
    %v992 = vpack.i.b16 %v991, %v990
    %v996 = vpack.i.b16 %v431, %v424
    %v998 = vshrl.u32 %v424, 16
    %v999 = vshrl.u32 %v431, 16
    %v1000 = vpack.i.b16 %v999, %v998
    %v1004 = vpack.i.b16 %v445, %v438
    %v1006 = vshrl.u32 %v438, 16
    %v1007 = vshrl.u32 %v445, 16
    %v1008 = vpack.i.b16 %v1007, %v1006
    %v1012 = vpack.i.b16 %v469, %v465
    %v1014 = vshrl.u32 %v465, 16
    %v1015 = vshrl.u32 %v469, 16
    %v1016 = vpack.i.b16 %v1015, %v1014
    %v1020 = vpack.i.b16 %v477, %v473
    %v1022 = vshrl.u32 %v473, 16
    %v1023 = vshrl.u32 %v477, 16
    %v1024 = vpack.i.b16 %v1023, %v1022
    %v1028 = vpack.i.b16 %v501, %v497
    %v1029 = vshrl.u32 %v497, 16
    %v1030 = vshrl.u32 %v501, 16
    %v1031 = vpack.i.b16 %v1030, %v1029
    %v1034 = vpack.i.b16 %v509, %v505
    %v1035 = vshrl.u32 %v505, 16
    %v1036 = vshrl.u32 %v509, 16
    %v1037 = vpack.i.b16 %v1036, %v1035
    %v1038 = vcombine.low %v510, %v520
    %v1040 = vunpack.c.l.s4 1983009808
    %v1041 = vunpack.c.0.s8 %v1040
    %v1042 = vlaneseq
    %v1043 = vshrl.u32 %v1042, 7
    %v1044 = vsub.s32 %v1041, %v1043
    %v1045 = vrot.slane %v1038, %v1044
    %v1046 = vcombine.low %v514, %v528
    %v1048 = vunpack.c.l.s4 1983009808
    %v1049 = vunpack.c.0.s8 %v1048
    %v1050 = vlaneseq
    %v1051 = vshrl.u32 %v1050, 7
    %v1052 = vsub.s32 %v1049, %v1051
    %v1053 = vrot.slane %v1046, %v1052
    %v1054 = vcombine.low %v1045, %v1053
    %v1055 = vcombine.high %v1045, %v1053
    %v1057 = vunpack.c.l.s4 1934713408
    %v1058 = vunpack.c.0.s8 %v1057
    %v1059 = vlaneseq
    %v1060 = vshrl.u32 %v1059, 7
    %v1061 = vsub.s32 %v1058, %v1060
    %v1062 = vrot.slane %v1054, %v1061
    %v1064 = vunpack.c.l.s4 1934713408
    %v1065 = vunpack.c.0.s8 %v1064
    %v1066 = vlaneseq
    %v1067 = vshrl.u32 %v1066, 7
    %v1068 = vsub.s32 %v1065, %v1067
    %v1069 = vrot.slane %v1055, %v1068
    %v1070 = vcombine.high %v1062, 0
    %v1071 = vcombine.high %v1069, 0
    %v1072 = vcombine.low %v512, %v524
    %v1074 = vunpack.c.l.s4 1983009808
    %v1075 = vunpack.c.0.s8 %v1074
    %v1076 = vlaneseq
    %v1077 = vshrl.u32 %v1076, 7
    %v1078 = vsub.s32 %v1075, %v1077
    %v1079 = vrot.slane %v1072, %v1078
    %v1080 = vcombine.low %v516, %v532
    %v1082 = vunpack.c.l.s4 1983009808
    %v1083 = vunpack.c.0.s8 %v1082
    %v1084 = vlaneseq
    %v1085 = vshrl.u32 %v1084, 7
    %v1086 = vsub.s32 %v1083, %v1085
    %v1087 = vrot.slane %v1080, %v1086
    %v1088 = vcombine.low %v1079, %v1087
    %v1089 = vcombine.high %v1079, %v1087
    %v1091 = vunpack.c.l.s4 1934713408
    %v1092 = vunpack.c.0.s8 %v1091
    %v1093 = vlaneseq
    %v1094 = vshrl.u32 %v1093, 7
    %v1095 = vsub.s32 %v1092, %v1094
    %v1096 = vrot.slane %v1088, %v1095
    %v1098 = vunpack.c.l.s4 1934713408
    %v1099 = vunpack.c.0.s8 %v1098
    %v1100 = vlaneseq
    %v1101 = vshrl.u32 %v1100, 7
    %v1102 = vsub.s32 %v1099, %v1101
    %v1103 = vrot.slane %v1089, %v1102
    %v1104 = vcombine.high %v1096, 0
    %v1105 = vcombine.high %v1103, 0
    %v1106 = vcombine.low %v536, %v552
    %v1108 = vunpack.c.l.s4 1983009808
    %v1109 = vunpack.c.0.s8 %v1108
    %v1110 = vlaneseq
    %v1111 = vshrl.u32 %v1110, 7
    %v1112 = vsub.s32 %v1109, %v1111
    %v1113 = vrot.slane %v1106, %v1112
    %v1114 = vcombine.low %v544, %v560
    %v1116 = vunpack.c.l.s4 1983009808
    %v1117 = vunpack.c.0.s8 %v1116
    %v1118 = vlaneseq
    %v1119 = vshrl.u32 %v1118, 7
    %v1120 = vsub.s32 %v1117, %v1119
    %v1121 = vrot.slane %v1114, %v1120
    %v1122 = vcombine.low %v1113, %v1121
    %v1123 = vcombine.high %v1113, %v1121
    %v1125 = vunpack.c.l.s4 1934713408
    %v1126 = vunpack.c.0.s8 %v1125
    %v1127 = vlaneseq
    %v1128 = vshrl.u32 %v1127, 7
    %v1129 = vsub.s32 %v1126, %v1128
    %v1130 = vrot.slane %v1122, %v1129
    %v1132 = vunpack.c.l.s4 1934713408
    %v1133 = vunpack.c.0.s8 %v1132
    %v1134 = vlaneseq
    %v1135 = vshrl.u32 %v1134, 7
    %v1136 = vsub.s32 %v1133, %v1135
    %v1137 = vrot.slane %v1123, %v1136
    %v1138 = vcombine.high %v1130, 0
    %v1139 = vcombine.high %v1137, 0
    %v1140 = vcombine.low %v540, %v556
    %v1142 = vunpack.c.l.s4 1983009808
    %v1143 = vunpack.c.0.s8 %v1142
    %v1144 = vlaneseq
    %v1145 = vshrl.u32 %v1144, 7
    %v1146 = vsub.s32 %v1143, %v1145
    %v1147 = vrot.slane %v1140, %v1146
    %v1148 = vcombine.low %v548, %v564
    %v1150 = vunpack.c.l.s4 1983009808
    %v1151 = vunpack.c.0.s8 %v1150
    %v1152 = vlaneseq
    %v1153 = vshrl.u32 %v1152, 7
    %v1154 = vsub.s32 %v1151, %v1153
    %v1155 = vrot.slane %v1148, %v1154
    %v1156 = vcombine.low %v1147, %v1155
    %v1157 = vcombine.high %v1147, %v1155
    %v1159 = vunpack.c.l.s4 1934713408
    %v1160 = vunpack.c.0.s8 %v1159
    %v1161 = vlaneseq
    %v1162 = vshrl.u32 %v1161, 7
    %v1163 = vsub.s32 %v1160, %v1162
    %v1164 = vrot.slane %v1156, %v1163
    %v1166 = vunpack.c.l.s4 1934713408
    %v1167 = vunpack.c.0.s8 %v1166
    %v1168 = vlaneseq
    %v1169 = vshrl.u32 %v1168, 7
    %v1170 = vsub.s32 %v1167, %v1169
    %v1171 = vrot.slane %v1157, %v1170
    %v1172 = vcombine.high %v1164, 0
    %v1173 = vcombine.high %v1171, 0
    %v1174 = vcombine.low %v568, %v584
    %v1176 = vunpack.c.l.s4 1983009808
    %v1177 = vunpack.c.0.s8 %v1176
    %v1178 = vlaneseq
    %v1179 = vshrl.u32 %v1178, 7
    %v1180 = vsub.s32 %v1177, %v1179
    %v1181 = vrot.slane %v1174, %v1180
    %v1182 = vcombine.low %v576, %v592
    %v1184 = vunpack.c.l.s4 1983009808
    %v1185 = vunpack.c.0.s8 %v1184
    %v1186 = vlaneseq
    %v1187 = vshrl.u32 %v1186, 7
    %v1188 = vsub.s32 %v1185, %v1187
    %v1189 = vrot.slane %v1182, %v1188
    %v1190 = vcombine.low %v1181, %v1189
    %v1191 = vcombine.high %v1181, %v1189
    %v1193 = vunpack.c.l.s4 1934713408
    %v1194 = vunpack.c.0.s8 %v1193
    %v1195 = vlaneseq
    %v1196 = vshrl.u32 %v1195, 7
    %v1197 = vsub.s32 %v1194, %v1196
    %v1198 = vrot.slane %v1190, %v1197
    %v1200 = vunpack.c.l.s4 1934713408
    %v1201 = vunpack.c.0.s8 %v1200
    %v1202 = vlaneseq
    %v1203 = vshrl.u32 %v1202, 7
    %v1204 = vsub.s32 %v1201, %v1203
    %v1205 = vrot.slane %v1191, %v1204
    %v1206 = vcombine.high %v1198, 0
    %v1207 = vcombine.high %v1205, 0
    %v1208 = vcombine.low %v572, %v588
    %v1210 = vunpack.c.l.s4 1983009808
    %v1211 = vunpack.c.0.s8 %v1210
    %v1212 = vlaneseq
    %v1213 = vshrl.u32 %v1212, 7
    %v1214 = vsub.s32 %v1211, %v1213
    %v1215 = vrot.slane %v1208, %v1214
    %v1216 = vcombine.low %v580, %v596
    %v1218 = vunpack.c.l.s4 1983009808
    %v1219 = vunpack.c.0.s8 %v1218
    %v1220 = vlaneseq
    %v1221 = vshrl.u32 %v1220, 7
    %v1222 = vsub.s32 %v1219, %v1221
    %v1223 = vrot.slane %v1216, %v1222
    %v1224 = vcombine.low %v1215, %v1223
    %v1225 = vcombine.high %v1215, %v1223
    %v1227 = vunpack.c.l.s4 1934713408
    %v1228 = vunpack.c.0.s8 %v1227
    %v1229 = vlaneseq
    %v1230 = vshrl.u32 %v1229, 7
    %v1231 = vsub.s32 %v1228, %v1230
    %v1232 = vrot.slane %v1224, %v1231
    %v1234 = vunpack.c.l.s4 1934713408
    %v1235 = vunpack.c.0.s8 %v1234
    %v1236 = vlaneseq
    %v1237 = vshrl.u32 %v1236, 7
    %v1238 = vsub.s32 %v1235, %v1237
    %v1239 = vrot.slane %v1225, %v1238
    %v1240 = vcombine.high %v1232, 0
    %v1241 = vcombine.high %v1239, 0
    %v1242 = vcombine.low %v600, %v616
    %v1244 = vunpack.c.l.s4 1983009808
    %v1245 = vunpack.c.0.s8 %v1244
    %v1246 = vlaneseq
    %v1247 = vshrl.u32 %v1246, 7
    %v1248 = vsub.s32 %v1245, %v1247
    %v1249 = vrot.slane %v1242, %v1248
    %v1250 = vcombine.low %v608, %v624
    %v1252 = vunpack.c.l.s4 1983009808
    %v1253 = vunpack.c.0.s8 %v1252
    %v1254 = vlaneseq
    %v1255 = vshrl.u32 %v1254, 7
    %v1256 = vsub.s32 %v1253, %v1255
    %v1257 = vrot.slane %v1250, %v1256
    %v1258 = vcombine.low %v1249, %v1257
    %v1259 = vcombine.high %v1249, %v1257
    %v1261 = vunpack.c.l.s4 1934713408
    %v1262 = vunpack.c.0.s8 %v1261
    %v1263 = vlaneseq
    %v1264 = vshrl.u32 %v1263, 7
    %v1265 = vsub.s32 %v1262, %v1264
    %v1266 = vrot.slane %v1258, %v1265
    %v1268 = vunpack.c.l.s4 1934713408
    %v1269 = vunpack.c.0.s8 %v1268
    %v1270 = vlaneseq
    %v1271 = vshrl.u32 %v1270, 7
    %v1272 = vsub.s32 %v1269, %v1271
    %v1273 = vrot.slane %v1259, %v1272
    %v1274 = vcombine.high %v1266, 0
    %v1275 = vcombine.high %v1273, 0
    %v1276 = vcombine.low %v604, %v620
    %v1278 = vunpack.c.l.s4 1983009808
    %v1279 = vunpack.c.0.s8 %v1278
    %v1280 = vlaneseq
    %v1281 = vshrl.u32 %v1280, 7
    %v1282 = vsub.s32 %v1279, %v1281
    %v1283 = vrot.slane %v1276, %v1282
    %v1284 = vcombine.low %v612, %v628
    %v1286 = vunpack.c.l.s4 1983009808
    %v1287 = vunpack.c.0.s8 %v1286
    %v1288 = vlaneseq
    %v1289 = vshrl.u32 %v1288, 7
    %v1290 = vsub.s32 %v1287, %v1289
    %v1291 = vrot.slane %v1284, %v1290
    %v1292 = vcombine.low %v1283, %v1291
    %v1293 = vcombine.high %v1283, %v1291
    %v1295 = vunpack.c.l.s4 1934713408
    %v1296 = vunpack.c.0.s8 %v1295
    %v1297 = vlaneseq
    %v1298 = vshrl.u32 %v1297, 7
    %v1299 = vsub.s32 %v1296, %v1298
    %v1300 = vrot.slane %v1292, %v1299
    %v1302 = vunpack.c.l.s4 1934713408
    %v1303 = vunpack.c.0.s8 %v1302
    %v1304 = vlaneseq
    %v1305 = vshrl.u32 %v1304, 7
    %v1306 = vsub.s32 %v1303, %v1305
    %v1307 = vrot.slane %v1293, %v1306
    %v1308 = vcombine.high %v1300, 0
    %v1309 = vcombine.high %v1307, 0
    %v1312 = vunpack.c.l.s4 1983009808
    %v1313 = vunpack.c.0.s8 %v1312
    %v1314 = vlaneseq
    %v1315 = vshrl.u32 %v1314, 7
    %v1316 = vsub.s32 %v1313, %v1315
    %v1317 = vrot.slane %v632, %v1316
    %v1320 = vunpack.c.l.s4 1983009808
    %v1321 = vunpack.c.0.s8 %v1320
    %v1322 = vlaneseq
    %v1323 = vshrl.u32 %v1322, 7
    %v1324 = vsub.s32 %v1321, %v1323
    %v1325 = vrot.slane %v638, %v1324
    %v1326 = vcombine.low %v1317, %v1325
    %v1327 = vcombine.high %v1317, %v1325
    %v1329 = vunpack.c.l.s4 1934713408
    %v1330 = vunpack.c.0.s8 %v1329
    %v1331 = vlaneseq
    %v1332 = vshrl.u32 %v1331, 7
    %v1333 = vsub.s32 %v1330, %v1332
    %v1334 = vrot.slane %v1326, %v1333
    %v1336 = vunpack.c.l.s4 1934713408
    %v1337 = vunpack.c.0.s8 %v1336
    %v1338 = vlaneseq
    %v1339 = vshrl.u32 %v1338, 7
    %v1340 = vsub.s32 %v1337, %v1339
    %v1341 = vrot.slane %v1327, %v1340
    %v1342 = vcombine.high %v1334, 0
    %v1343 = vcombine.high %v1341, 0
    %v1346 = vunpack.c.l.s4 1983009808
    %v1347 = vunpack.c.0.s8 %v1346
    %v1348 = vlaneseq
    %v1349 = vshrl.u32 %v1348, 7
    %v1350 = vsub.s32 %v1347, %v1349
    %v1351 = vrot.slane %v635, %v1350
    %v1354 = vunpack.c.l.s4 1983009808
    %v1355 = vunpack.c.0.s8 %v1354
    %v1356 = vlaneseq
    %v1357 = vshrl.u32 %v1356, 7
    %v1358 = vsub.s32 %v1355, %v1357
    %v1359 = vrot.slane %v641, %v1358
    %v1360 = vcombine.low %v1351, %v1359
    %v1361 = vcombine.high %v1351, %v1359
    %v1363 = vunpack.c.l.s4 1934713408
    %v1364 = vunpack.c.0.s8 %v1363
    %v1365 = vlaneseq
    %v1366 = vshrl.u32 %v1365, 7
    %v1367 = vsub.s32 %v1364, %v1366
    %v1368 = vrot.slane %v1360, %v1367
    %v1370 = vunpack.c.l.s4 1934713408
    %v1371 = vunpack.c.0.s8 %v1370
    %v1372 = vlaneseq
    %v1373 = vshrl.u32 %v1372, 7
    %v1374 = vsub.s32 %v1371, %v1373
    %v1375 = vrot.slane %v1361, %v1374
    %v1376 = vcombine.high %v1368, 0
    %v1377 = vcombine.high %v1375, 0
    %v1378 = vcombine.low %v642, %v652
    %v1380 = vunpack.c.l.s4 1983009808
    %v1381 = vunpack.c.0.s8 %v1380
    %v1382 = vlaneseq
    %v1383 = vshrl.u32 %v1382, 7
    %v1384 = vsub.s32 %v1381, %v1383
    %v1385 = vrot.slane %v1378, %v1384
    %v1386 = vcombine.low %v646, %v660
    %v1388 = vunpack.c.l.s4 1983009808
    %v1389 = vunpack.c.0.s8 %v1388
    %v1390 = vlaneseq
    %v1391 = vshrl.u32 %v1390, 7
    %v1392 = vsub.s32 %v1389, %v1391
    %v1393 = vrot.slane %v1386, %v1392
    %v1394 = vcombine.low %v1385, %v1393
    %v1395 = vcombine.high %v1385, %v1393
    %v1397 = vunpack.c.l.s4 1934713408
    %v1398 = vunpack.c.0.s8 %v1397
    %v1399 = vlaneseq
    %v1400 = vshrl.u32 %v1399, 7
    %v1401 = vsub.s32 %v1398, %v1400
    %v1402 = vrot.slane %v1394, %v1401
    %v1404 = vunpack.c.l.s4 1934713408
    %v1405 = vunpack.c.0.s8 %v1404
    %v1406 = vlaneseq
    %v1407 = vshrl.u32 %v1406, 7
    %v1408 = vsub.s32 %v1405, %v1407
    %v1409 = vrot.slane %v1395, %v1408
    %v1410 = vcombine.high %v1402, 0
    %v1411 = vcombine.high %v1409, 0
    %v1412 = vcombine.low %v644, %v656
    %v1414 = vunpack.c.l.s4 1983009808
    %v1415 = vunpack.c.0.s8 %v1414
    %v1416 = vlaneseq
    %v1417 = vshrl.u32 %v1416, 7
    %v1418 = vsub.s32 %v1415, %v1417
    %v1419 = vrot.slane %v1412, %v1418
    %v1420 = vcombine.low %v648, %v664
    %v1422 = vunpack.c.l.s4 1983009808
    %v1423 = vunpack.c.0.s8 %v1422
    %v1424 = vlaneseq
    %v1425 = vshrl.u32 %v1424, 7
    %v1426 = vsub.s32 %v1423, %v1425
    %v1427 = vrot.slane %v1420, %v1426
    %v1428 = vcombine.low %v1419, %v1427
    %v1429 = vcombine.high %v1419, %v1427
    %v1431 = vunpack.c.l.s4 1934713408
    %v1432 = vunpack.c.0.s8 %v1431
    %v1433 = vlaneseq
    %v1434 = vshrl.u32 %v1433, 7
    %v1435 = vsub.s32 %v1432, %v1434
    %v1436 = vrot.slane %v1428, %v1435
    %v1438 = vunpack.c.l.s4 1934713408
    %v1439 = vunpack.c.0.s8 %v1438
    %v1440 = vlaneseq
    %v1441 = vshrl.u32 %v1440, 7
    %v1442 = vsub.s32 %v1439, %v1441
    %v1443 = vrot.slane %v1429, %v1442
    %v1444 = vcombine.high %v1436, 0
    %v1445 = vcombine.high %v1443, 0
    %v1446 = vcombine.low %v668, %v684
    %v1448 = vunpack.c.l.s4 1983009808
    %v1449 = vunpack.c.0.s8 %v1448
    %v1450 = vlaneseq
    %v1451 = vshrl.u32 %v1450, 7
    %v1452 = vsub.s32 %v1449, %v1451
    %v1453 = vrot.slane %v1446, %v1452
    %v1454 = vcombine.low %v676, %v692
    %v1456 = vunpack.c.l.s4 1983009808
    %v1457 = vunpack.c.0.s8 %v1456
    %v1458 = vlaneseq
    %v1459 = vshrl.u32 %v1458, 7
    %v1460 = vsub.s32 %v1457, %v1459
    %v1461 = vrot.slane %v1454, %v1460
    %v1462 = vcombine.low %v1453, %v1461
    %v1463 = vcombine.high %v1453, %v1461
    %v1465 = vunpack.c.l.s4 1934713408
    %v1466 = vunpack.c.0.s8 %v1465
    %v1467 = vlaneseq
    %v1468 = vshrl.u32 %v1467, 7
    %v1469 = vsub.s32 %v1466, %v1468
    %v1470 = vrot.slane %v1462, %v1469
    %v1472 = vunpack.c.l.s4 1934713408
    %v1473 = vunpack.c.0.s8 %v1472
    %v1474 = vlaneseq
    %v1475 = vshrl.u32 %v1474, 7
    %v1476 = vsub.s32 %v1473, %v1475
    %v1477 = vrot.slane %v1463, %v1476
    %v1478 = vcombine.high %v1470, 0
    %v1479 = vcombine.high %v1477, 0
    %v1480 = vcombine.low %v672, %v688
    %v1482 = vunpack.c.l.s4 1983009808
    %v1483 = vunpack.c.0.s8 %v1482
    %v1484 = vlaneseq
    %v1485 = vshrl.u32 %v1484, 7
    %v1486 = vsub.s32 %v1483, %v1485
    %v1487 = vrot.slane %v1480, %v1486
    %v1488 = vcombine.low %v680, %v696
    %v1490 = vunpack.c.l.s4 1983009808
    %v1491 = vunpack.c.0.s8 %v1490
    %v1492 = vlaneseq
    %v1493 = vshrl.u32 %v1492, 7
    %v1494 = vsub.s32 %v1491, %v1493
    %v1495 = vrot.slane %v1488, %v1494
    %v1496 = vcombine.low %v1487, %v1495
    %v1497 = vcombine.high %v1487, %v1495
    %v1499 = vunpack.c.l.s4 1934713408
    %v1500 = vunpack.c.0.s8 %v1499
    %v1501 = vlaneseq
    %v1502 = vshrl.u32 %v1501, 7
    %v1503 = vsub.s32 %v1500, %v1502
    %v1504 = vrot.slane %v1496, %v1503
    %v1506 = vunpack.c.l.s4 1934713408
    %v1507 = vunpack.c.0.s8 %v1506
    %v1508 = vlaneseq
    %v1509 = vshrl.u32 %v1508, 7
    %v1510 = vsub.s32 %v1507, %v1509
    %v1511 = vrot.slane %v1497, %v1510
    %v1512 = vcombine.high %v1504, 0
    %v1513 = vcombine.high %v1511, 0
    %v1514 = vcombine.low %v700, %v716
    %v1516 = vunpack.c.l.s4 1983009808
    %v1517 = vunpack.c.0.s8 %v1516
    %v1518 = vlaneseq
    %v1519 = vshrl.u32 %v1518, 7
    %v1520 = vsub.s32 %v1517, %v1519
    %v1521 = vrot.slane %v1514, %v1520
    %v1522 = vcombine.low %v708, %v724
    %v1524 = vunpack.c.l.s4 1983009808
    %v1525 = vunpack.c.0.s8 %v1524
    %v1526 = vlaneseq
    %v1527 = vshrl.u32 %v1526, 7
    %v1528 = vsub.s32 %v1525, %v1527
    %v1529 = vrot.slane %v1522, %v1528
    %v1530 = vcombine.low %v1521, %v1529
    %v1531 = vcombine.high %v1521, %v1529
    %v1533 = vunpack.c.l.s4 1934713408
    %v1534 = vunpack.c.0.s8 %v1533
    %v1535 = vlaneseq
    %v1536 = vshrl.u32 %v1535, 7
    %v1537 = vsub.s32 %v1534, %v1536
    %v1538 = vrot.slane %v1530, %v1537
    %v1540 = vunpack.c.l.s4 1934713408
    %v1541 = vunpack.c.0.s8 %v1540
    %v1542 = vlaneseq
    %v1543 = vshrl.u32 %v1542, 7
    %v1544 = vsub.s32 %v1541, %v1543
    %v1545 = vrot.slane %v1531, %v1544
    %v1546 = vcombine.high %v1538, 0
    %v1547 = vcombine.high %v1545, 0
    %v1548 = vcombine.low %v704, %v720
    %v1550 = vunpack.c.l.s4 1983009808
    %v1551 = vunpack.c.0.s8 %v1550
    %v1552 = vlaneseq
    %v1553 = vshrl.u32 %v1552, 7
    %v1554 = vsub.s32 %v1551, %v1553
    %v1555 = vrot.slane %v1548, %v1554
    %v1556 = vcombine.low %v712, %v728
    %v1558 = vunpack.c.l.s4 1983009808
    %v1559 = vunpack.c.0.s8 %v1558
    %v1560 = vlaneseq
    %v1561 = vshrl.u32 %v1560, 7
    %v1562 = vsub.s32 %v1559, %v1561
    %v1563 = vrot.slane %v1556, %v1562
    %v1564 = vcombine.low %v1555, %v1563
    %v1565 = vcombine.high %v1555, %v1563
    %v1567 = vunpack.c.l.s4 1934713408
    %v1568 = vunpack.c.0.s8 %v1567
    %v1569 = vlaneseq
    %v1570 = vshrl.u32 %v1569, 7
    %v1571 = vsub.s32 %v1568, %v1570
    %v1572 = vrot.slane %v1564, %v1571
    %v1574 = vunpack.c.l.s4 1934713408
    %v1575 = vunpack.c.0.s8 %v1574
    %v1576 = vlaneseq
    %v1577 = vshrl.u32 %v1576, 7
    %v1578 = vsub.s32 %v1575, %v1577
    %v1579 = vrot.slane %v1565, %v1578
    %v1580 = vcombine.high %v1572, 0
    %v1581 = vcombine.high %v1579, 0
    %v1582 = vcombine.low %v732, %v748
    %v1584 = vunpack.c.l.s4 1983009808
    %v1585 = vunpack.c.0.s8 %v1584
    %v1586 = vlaneseq
    %v1587 = vshrl.u32 %v1586, 7
    %v1588 = vsub.s32 %v1585, %v1587
    %v1589 = vrot.slane %v1582, %v1588
    %v1590 = vcombine.low %v740, %v756
    %v1592 = vunpack.c.l.s4 1983009808
    %v1593 = vunpack.c.0.s8 %v1592
    %v1594 = vlaneseq
    %v1595 = vshrl.u32 %v1594, 7
    %v1596 = vsub.s32 %v1593, %v1595
    %v1597 = vrot.slane %v1590, %v1596
    %v1598 = vcombine.low %v1589, %v1597
    %v1599 = vcombine.high %v1589, %v1597
    %v1601 = vunpack.c.l.s4 1934713408
    %v1602 = vunpack.c.0.s8 %v1601
    %v1603 = vlaneseq
    %v1604 = vshrl.u32 %v1603, 7
    %v1605 = vsub.s32 %v1602, %v1604
    %v1606 = vrot.slane %v1598, %v1605
    %v1608 = vunpack.c.l.s4 1934713408
    %v1609 = vunpack.c.0.s8 %v1608
    %v1610 = vlaneseq
    %v1611 = vshrl.u32 %v1610, 7
    %v1612 = vsub.s32 %v1609, %v1611
    %v1613 = vrot.slane %v1599, %v1612
    %v1614 = vcombine.high %v1606, 0
    %v1615 = vcombine.high %v1613, 0
    %v1616 = vcombine.low %v736, %v752
    %v1618 = vunpack.c.l.s4 1983009808
    %v1619 = vunpack.c.0.s8 %v1618
    %v1620 = vlaneseq
    %v1621 = vshrl.u32 %v1620, 7
    %v1622 = vsub.s32 %v1619, %v1621
    %v1623 = vrot.slane %v1616, %v1622
    %v1624 = vcombine.low %v744, %v760
    %v1626 = vunpack.c.l.s4 1983009808
    %v1627 = vunpack.c.0.s8 %v1626
    %v1628 = vlaneseq
    %v1629 = vshrl.u32 %v1628, 7
    %v1630 = vsub.s32 %v1627, %v1629
    %v1631 = vrot.slane %v1624, %v1630
    %v1632 = vcombine.low %v1623, %v1631
    %v1633 = vcombine.high %v1623, %v1631
    %v1635 = vunpack.c.l.s4 1934713408
    %v1636 = vunpack.c.0.s8 %v1635
    %v1637 = vlaneseq
    %v1638 = vshrl.u32 %v1637, 7
    %v1639 = vsub.s32 %v1636, %v1638
    %v1640 = vrot.slane %v1632, %v1639
    %v1642 = vunpack.c.l.s4 1934713408
    %v1643 = vunpack.c.0.s8 %v1642
    %v1644 = vlaneseq
    %v1645 = vshrl.u32 %v1644, 7
    %v1646 = vsub.s32 %v1643, %v1645
    %v1647 = vrot.slane %v1633, %v1646
    %v1648 = vcombine.high %v1640, 0
    %v1649 = vcombine.high %v1647, 0
    %v1652 = vunpack.c.l.s4 1983009808
    %v1653 = vunpack.c.0.s8 %v1652
    %v1654 = vlaneseq
    %v1655 = vshrl.u32 %v1654, 7
    %v1656 = vsub.s32 %v1653, %v1655
    %v1657 = vrot.slane %v764, %v1656
    %v1660 = vunpack.c.l.s4 1983009808
    %v1661 = vunpack.c.0.s8 %v1660
    %v1662 = vlaneseq
    %v1663 = vshrl.u32 %v1662, 7
    %v1664 = vsub.s32 %v1661, %v1663
    %v1665 = vrot.slane %v770, %v1664
    %v1666 = vcombine.low %v1657, %v1665
    %v1667 = vcombine.high %v1657, %v1665
    %v1669 = vunpack.c.l.s4 1934713408
    %v1670 = vunpack.c.0.s8 %v1669
    %v1671 = vlaneseq
    %v1672 = vshrl.u32 %v1671, 7
    %v1673 = vsub.s32 %v1670, %v1672
    %v1674 = vrot.slane %v1666, %v1673
    %v1676 = vunpack.c.l.s4 1934713408
    %v1677 = vunpack.c.0.s8 %v1676
    %v1678 = vlaneseq
    %v1679 = vshrl.u32 %v1678, 7
    %v1680 = vsub.s32 %v1677, %v1679
    %v1681 = vrot.slane %v1667, %v1680
    %v1682 = vcombine.high %v1674, 0
    %v1683 = vcombine.high %v1681, 0
    %v1686 = vunpack.c.l.s4 1983009808
    %v1687 = vunpack.c.0.s8 %v1686
    %v1688 = vlaneseq
    %v1689 = vshrl.u32 %v1688, 7
    %v1690 = vsub.s32 %v1687, %v1689
    %v1691 = vrot.slane %v767, %v1690
    %v1694 = vunpack.c.l.s4 1983009808
    %v1695 = vunpack.c.0.s8 %v1694
    %v1696 = vlaneseq
    %v1697 = vshrl.u32 %v1696, 7
    %v1698 = vsub.s32 %v1695, %v1697
    %v1699 = vrot.slane %v773, %v1698
    %v1700 = vcombine.low %v1691, %v1699
    %v1701 = vcombine.high %v1691, %v1699
    %v1703 = vunpack.c.l.s4 1934713408
    %v1704 = vunpack.c.0.s8 %v1703
    %v1705 = vlaneseq
    %v1706 = vshrl.u32 %v1705, 7
    %v1707 = vsub.s32 %v1704, %v1706
    %v1708 = vrot.slane %v1700, %v1707
    %v1710 = vunpack.c.l.s4 1934713408
    %v1711 = vunpack.c.0.s8 %v1710
    %v1712 = vlaneseq
    %v1713 = vshrl.u32 %v1712, 7
    %v1714 = vsub.s32 %v1711, %v1713
    %v1715 = vrot.slane %v1701, %v1714
    %v1716 = vcombine.high %v1708, 0
    %v1717 = vcombine.high %v1715, 0
    %v1718 = vcombine.low %v774, %v784
    %v1720 = vunpack.c.l.s4 1983009808
    %v1721 = vunpack.c.0.s8 %v1720
    %v1722 = vlaneseq
    %v1723 = vshrl.u32 %v1722, 7
    %v1724 = vsub.s32 %v1721, %v1723
    %v1725 = vrot.slane %v1718, %v1724
    %v1726 = vcombine.low %v778, %v792
    %v1728 = vunpack.c.l.s4 1983009808
    %v1729 = vunpack.c.0.s8 %v1728
    %v1730 = vlaneseq
    %v1731 = vshrl.u32 %v1730, 7
    %v1732 = vsub.s32 %v1729, %v1731
    %v1733 = vrot.slane %v1726, %v1732
    %v1734 = vcombine.low %v1725, %v1733
    %v1735 = vcombine.high %v1725, %v1733
    %v1737 = vunpack.c.l.s4 1934713408
    %v1738 = vunpack.c.0.s8 %v1737
    %v1739 = vlaneseq
    %v1740 = vshrl.u32 %v1739, 7
    %v1741 = vsub.s32 %v1738, %v1740
    %v1742 = vrot.slane %v1734, %v1741
    %v1744 = vunpack.c.l.s4 1934713408
    %v1745 = vunpack.c.0.s8 %v1744
    %v1746 = vlaneseq
    %v1747 = vshrl.u32 %v1746, 7
    %v1748 = vsub.s32 %v1745, %v1747
    %v1749 = vrot.slane %v1735, %v1748
    %v1750 = vcombine.high %v1742, 0
    %v1751 = vcombine.high %v1749, 0
    %v1752 = vcombine.low %v776, %v788
    %v1754 = vunpack.c.l.s4 1983009808
    %v1755 = vunpack.c.0.s8 %v1754
    %v1756 = vlaneseq
    %v1757 = vshrl.u32 %v1756, 7
    %v1758 = vsub.s32 %v1755, %v1757
    %v1759 = vrot.slane %v1752, %v1758
    %v1760 = vcombine.low %v780, %v796
    %v1762 = vunpack.c.l.s4 1983009808
    %v1763 = vunpack.c.0.s8 %v1762
    %v1764 = vlaneseq
    %v1765 = vshrl.u32 %v1764, 7
    %v1766 = vsub.s32 %v1763, %v1765
    %v1767 = vrot.slane %v1760, %v1766
    %v1768 = vcombine.low %v1759, %v1767
    %v1769 = vcombine.high %v1759, %v1767
    %v1771 = vunpack.c.l.s4 1934713408
    %v1772 = vunpack.c.0.s8 %v1771
    %v1773 = vlaneseq
    %v1774 = vshrl.u32 %v1773, 7
    %v1775 = vsub.s32 %v1772, %v1774
    %v1776 = vrot.slane %v1768, %v1775
    %v1778 = vunpack.c.l.s4 1934713408
    %v1779 = vunpack.c.0.s8 %v1778
    %v1780 = vlaneseq
    %v1781 = vshrl.u32 %v1780, 7
    %v1782 = vsub.s32 %v1779, %v1781
    %v1783 = vrot.slane %v1769, %v1782
    %v1784 = vcombine.high %v1776, 0
    %v1785 = vcombine.high %v1783, 0
    %v1786 = vcombine.low %v800, %v816
    %v1788 = vunpack.c.l.s4 1983009808
    %v1789 = vunpack.c.0.s8 %v1788
    %v1790 = vlaneseq
    %v1791 = vshrl.u32 %v1790, 7
    %v1792 = vsub.s32 %v1789, %v1791
    %v1793 = vrot.slane %v1786, %v1792
    %v1794 = vcombine.low %v808, %v824
    %v1796 = vunpack.c.l.s4 1983009808
    %v1797 = vunpack.c.0.s8 %v1796
    %v1798 = vlaneseq
    %v1799 = vshrl.u32 %v1798, 7
    %v1800 = vsub.s32 %v1797, %v1799
    %v1801 = vrot.slane %v1794, %v1800
    %v1802 = vcombine.low %v1793, %v1801
    %v1803 = vcombine.high %v1793, %v1801
    %v1805 = vunpack.c.l.s4 1934713408
    %v1806 = vunpack.c.0.s8 %v1805
    %v1807 = vlaneseq
    %v1808 = vshrl.u32 %v1807, 7
    %v1809 = vsub.s32 %v1806, %v1808
    %v1810 = vrot.slane %v1802, %v1809
    %v1812 = vunpack.c.l.s4 1934713408
    %v1813 = vunpack.c.0.s8 %v1812
    %v1814 = vlaneseq
    %v1815 = vshrl.u32 %v1814, 7
    %v1816 = vsub.s32 %v1813, %v1815
    %v1817 = vrot.slane %v1803, %v1816
    %v1818 = vcombine.high %v1810, 0
    %v1819 = vcombine.high %v1817, 0
    %v1820 = vcombine.low %v804, %v820
    %v1822 = vunpack.c.l.s4 1983009808
    %v1823 = vunpack.c.0.s8 %v1822
    %v1824 = vlaneseq
    %v1825 = vshrl.u32 %v1824, 7
    %v1826 = vsub.s32 %v1823, %v1825
    %v1827 = vrot.slane %v1820, %v1826
    %v1828 = vcombine.low %v812, %v828
    %v1830 = vunpack.c.l.s4 1983009808
    %v1831 = vunpack.c.0.s8 %v1830
    %v1832 = vlaneseq
    %v1833 = vshrl.u32 %v1832, 7
    %v1834 = vsub.s32 %v1831, %v1833
    %v1835 = vrot.slane %v1828, %v1834
    %v1836 = vcombine.low %v1827, %v1835
    %v1837 = vcombine.high %v1827, %v1835
    %v1839 = vunpack.c.l.s4 1934713408
    %v1840 = vunpack.c.0.s8 %v1839
    %v1841 = vlaneseq
    %v1842 = vshrl.u32 %v1841, 7
    %v1843 = vsub.s32 %v1840, %v1842
    %v1844 = vrot.slane %v1836, %v1843
    %v1846 = vunpack.c.l.s4 1934713408
    %v1847 = vunpack.c.0.s8 %v1846
    %v1848 = vlaneseq
    %v1849 = vshrl.u32 %v1848, 7
    %v1850 = vsub.s32 %v1847, %v1849
    %v1851 = vrot.slane %v1837, %v1850
    %v1852 = vcombine.high %v1844, 0
    %v1853 = vcombine.high %v1851, 0
    %v1854 = vcombine.low %v832, %v848
    %v1856 = vunpack.c.l.s4 1983009808
    %v1857 = vunpack.c.0.s8 %v1856
    %v1858 = vlaneseq
    %v1859 = vshrl.u32 %v1858, 7
    %v1860 = vsub.s32 %v1857, %v1859
    %v1861 = vrot.slane %v1854, %v1860
    %v1862 = vcombine.low %v840, %v856
    %v1864 = vunpack.c.l.s4 1983009808
    %v1865 = vunpack.c.0.s8 %v1864
    %v1866 = vlaneseq
    %v1867 = vshrl.u32 %v1866, 7
    %v1868 = vsub.s32 %v1865, %v1867
    %v1869 = vrot.slane %v1862, %v1868
    %v1870 = vcombine.low %v1861, %v1869
    %v1871 = vcombine.high %v1861, %v1869
    %v1873 = vunpack.c.l.s4 1934713408
    %v1874 = vunpack.c.0.s8 %v1873
    %v1875 = vlaneseq
    %v1876 = vshrl.u32 %v1875, 7
    %v1877 = vsub.s32 %v1874, %v1876
    %v1878 = vrot.slane %v1870, %v1877
    %v1880 = vunpack.c.l.s4 1934713408
    %v1881 = vunpack.c.0.s8 %v1880
    %v1882 = vlaneseq
    %v1883 = vshrl.u32 %v1882, 7
    %v1884 = vsub.s32 %v1881, %v1883
    %v1885 = vrot.slane %v1871, %v1884
    %v1886 = vcombine.high %v1878, 0
    %v1887 = vcombine.high %v1885, 0
    %v1888 = vcombine.low %v836, %v852
    %v1890 = vunpack.c.l.s4 1983009808
    %v1891 = vunpack.c.0.s8 %v1890
    %v1892 = vlaneseq
    %v1893 = vshrl.u32 %v1892, 7
    %v1894 = vsub.s32 %v1891, %v1893
    %v1895 = vrot.slane %v1888, %v1894
    %v1896 = vcombine.low %v844, %v860
    %v1898 = vunpack.c.l.s4 1983009808
    %v1899 = vunpack.c.0.s8 %v1898
    %v1900 = vlaneseq
    %v1901 = vshrl.u32 %v1900, 7
    %v1902 = vsub.s32 %v1899, %v1901
    %v1903 = vrot.slane %v1896, %v1902
    %v1904 = vcombine.low %v1895, %v1903
    %v1905 = vcombine.high %v1895, %v1903
    %v1907 = vunpack.c.l.s4 1934713408
    %v1908 = vunpack.c.0.s8 %v1907
    %v1909 = vlaneseq
    %v1910 = vshrl.u32 %v1909, 7
    %v1911 = vsub.s32 %v1908, %v1910
    %v1912 = vrot.slane %v1904, %v1911
    %v1914 = vunpack.c.l.s4 1934713408
    %v1915 = vunpack.c.0.s8 %v1914
    %v1916 = vlaneseq
    %v1917 = vshrl.u32 %v1916, 7
    %v1918 = vsub.s32 %v1915, %v1917
    %v1919 = vrot.slane %v1905, %v1918
    %v1920 = vcombine.high %v1912, 0
    %v1921 = vcombine.high %v1919, 0
    %v1922 = vcombine.low %v864, %v880
    %v1924 = vunpack.c.l.s4 1983009808
    %v1925 = vunpack.c.0.s8 %v1924
    %v1926 = vlaneseq
    %v1927 = vshrl.u32 %v1926, 7
    %v1928 = vsub.s32 %v1925, %v1927
    %v1929 = vrot.slane %v1922, %v1928
    %v1930 = vcombine.low %v872, %v888
    %v1932 = vunpack.c.l.s4 1983009808
    %v1933 = vunpack.c.0.s8 %v1932
    %v1934 = vlaneseq
    %v1935 = vshrl.u32 %v1934, 7
    %v1936 = vsub.s32 %v1933, %v1935
    %v1937 = vrot.slane %v1930, %v1936
    %v1938 = vcombine.low %v1929, %v1937
    %v1939 = vcombine.high %v1929, %v1937
    %v1941 = vunpack.c.l.s4 1934713408
    %v1942 = vunpack.c.0.s8 %v1941
    %v1943 = vlaneseq
    %v1944 = vshrl.u32 %v1943, 7
    %v1945 = vsub.s32 %v1942, %v1944
    %v1946 = vrot.slane %v1938, %v1945
    %v1948 = vunpack.c.l.s4 1934713408
    %v1949 = vunpack.c.0.s8 %v1948
    %v1950 = vlaneseq
    %v1951 = vshrl.u32 %v1950, 7
    %v1952 = vsub.s32 %v1949, %v1951
    %v1953 = vrot.slane %v1939, %v1952
    %v1954 = vcombine.high %v1946, 0
    %v1955 = vcombine.high %v1953, 0
    %v1956 = vcombine.low %v868, %v884
    %v1958 = vunpack.c.l.s4 1983009808
    %v1959 = vunpack.c.0.s8 %v1958
    %v1960 = vlaneseq
    %v1961 = vshrl.u32 %v1960, 7
    %v1962 = vsub.s32 %v1959, %v1961
    %v1963 = vrot.slane %v1956, %v1962
    %v1964 = vcombine.low %v876, %v892
    %v1966 = vunpack.c.l.s4 1983009808
    %v1967 = vunpack.c.0.s8 %v1966
    %v1968 = vlaneseq
    %v1969 = vshrl.u32 %v1968, 7
    %v1970 = vsub.s32 %v1967, %v1969
    %v1971 = vrot.slane %v1964, %v1970
    %v1972 = vcombine.low %v1963, %v1971
    %v1973 = vcombine.high %v1963, %v1971
    %v1975 = vunpack.c.l.s4 1934713408
    %v1976 = vunpack.c.0.s8 %v1975
    %v1977 = vlaneseq
    %v1978 = vshrl.u32 %v1977, 7
    %v1979 = vsub.s32 %v1976, %v1978
    %v1980 = vrot.slane %v1972, %v1979
    %v1982 = vunpack.c.l.s4 1934713408
    %v1983 = vunpack.c.0.s8 %v1982
    %v1984 = vlaneseq
    %v1985 = vshrl.u32 %v1984, 7
    %v1986 = vsub.s32 %v1983, %v1985
    %v1987 = vrot.slane %v1973, %v1986
    %v1988 = vcombine.high %v1980, 0
    %v1989 = vcombine.high %v1987, 0
    %v1992 = vunpack.c.l.s4 1983009808
    %v1993 = vunpack.c.0.s8 %v1992
    %v1994 = vlaneseq
    %v1995 = vshrl.u32 %v1994, 7
    %v1996 = vsub.s32 %v1993, %v1995
    %v1997 = vrot.slane %v896, %v1996
    %v2000 = vunpack.c.l.s4 1983009808
    %v2001 = vunpack.c.0.s8 %v2000
    %v2002 = vlaneseq
    %v2003 = vshrl.u32 %v2002, 7
    %v2004 = vsub.s32 %v2001, %v2003
    %v2005 = vrot.slane %v902, %v2004
    %v2006 = vcombine.low %v1997, %v2005
    %v2007 = vcombine.high %v1997, %v2005
    %v2009 = vunpack.c.l.s4 1934713408
    %v2010 = vunpack.c.0.s8 %v2009
    %v2011 = vlaneseq
    %v2012 = vshrl.u32 %v2011, 7
    %v2013 = vsub.s32 %v2010, %v2012
    %v2014 = vrot.slane %v2006, %v2013
    %v2016 = vunpack.c.l.s4 1934713408
    %v2017 = vunpack.c.0.s8 %v2016
    %v2018 = vlaneseq
    %v2019 = vshrl.u32 %v2018, 7
    %v2020 = vsub.s32 %v2017, %v2019
    %v2021 = vrot.slane %v2007, %v2020
    %v2022 = vcombine.high %v2014, 0
    %v2023 = vcombine.high %v2021, 0
    %v2026 = vunpack.c.l.s4 1983009808
    %v2027 = vunpack.c.0.s8 %v2026
    %v2028 = vlaneseq
    %v2029 = vshrl.u32 %v2028, 7
    %v2030 = vsub.s32 %v2027, %v2029
    %v2031 = vrot.slane %v899, %v2030
    %v2034 = vunpack.c.l.s4 1983009808
    %v2035 = vunpack.c.0.s8 %v2034
    %v2036 = vlaneseq
    %v2037 = vshrl.u32 %v2036, 7
    %v2038 = vsub.s32 %v2035, %v2037
    %v2039 = vrot.slane %v905, %v2038
    %v2040 = vcombine.low %v2031, %v2039
    %v2041 = vcombine.high %v2031, %v2039
    %v2043 = vunpack.c.l.s4 1934713408
    %v2044 = vunpack.c.0.s8 %v2043
    %v2045 = vlaneseq
    %v2046 = vshrl.u32 %v2045, 7
    %v2047 = vsub.s32 %v2044, %v2046
    %v2048 = vrot.slane %v2040, %v2047
    %v2050 = vunpack.c.l.s4 1934713408
    %v2051 = vunpack.c.0.s8 %v2050
    %v2052 = vlaneseq
    %v2053 = vshrl.u32 %v2052, 7
    %v2054 = vsub.s32 %v2051, %v2053
    %v2055 = vrot.slane %v2041, %v2054
    %v2056 = vcombine.high %v2048, 0
    %v2057 = vcombine.high %v2055, 0
    %v2058 = vcombine.low %v906, %v916
    %v2060 = vunpack.c.l.s4 1983009808
    %v2061 = vunpack.c.0.s8 %v2060
    %v2062 = vlaneseq
    %v2063 = vshrl.u32 %v2062, 7
    %v2064 = vsub.s32 %v2061, %v2063
    %v2065 = vrot.slane %v2058, %v2064
    %v2066 = vcombine.low %v910, %v924
    %v2068 = vunpack.c.l.s4 1983009808
    %v2069 = vunpack.c.0.s8 %v2068
    %v2070 = vlaneseq
    %v2071 = vshrl.u32 %v2070, 7
    %v2072 = vsub.s32 %v2069, %v2071
    %v2073 = vrot.slane %v2066, %v2072
    %v2074 = vcombine.low %v2065, %v2073
    %v2075 = vcombine.high %v2065, %v2073
    %v2077 = vunpack.c.l.s4 1934713408
    %v2078 = vunpack.c.0.s8 %v2077
    %v2079 = vlaneseq
    %v2080 = vshrl.u32 %v2079, 7
    %v2081 = vsub.s32 %v2078, %v2080
    %v2082 = vrot.slane %v2074, %v2081
    %v2084 = vunpack.c.l.s4 1934713408
    %v2085 = vunpack.c.0.s8 %v2084
    %v2086 = vlaneseq
    %v2087 = vshrl.u32 %v2086, 7
    %v2088 = vsub.s32 %v2085, %v2087
    %v2089 = vrot.slane %v2075, %v2088
    %v2090 = vcombine.high %v2082, 0
    %v2091 = vcombine.high %v2089, 0
    %v2092 = vcombine.low %v908, %v920
    %v2094 = vunpack.c.l.s4 1983009808
    %v2095 = vunpack.c.0.s8 %v2094
    %v2096 = vlaneseq
    %v2097 = vshrl.u32 %v2096, 7
    %v2098 = vsub.s32 %v2095, %v2097
    %v2099 = vrot.slane %v2092, %v2098
    %v2100 = vcombine.low %v912, %v928
    %v2102 = vunpack.c.l.s4 1983009808
    %v2103 = vunpack.c.0.s8 %v2102
    %v2104 = vlaneseq
    %v2105 = vshrl.u32 %v2104, 7
    %v2106 = vsub.s32 %v2103, %v2105
    %v2107 = vrot.slane %v2100, %v2106
    %v2108 = vcombine.low %v2099, %v2107
    %v2109 = vcombine.high %v2099, %v2107
    %v2111 = vunpack.c.l.s4 1934713408
    %v2112 = vunpack.c.0.s8 %v2111
    %v2113 = vlaneseq
    %v2114 = vshrl.u32 %v2113, 7
    %v2115 = vsub.s32 %v2112, %v2114
    %v2116 = vrot.slane %v2108, %v2115
    %v2118 = vunpack.c.l.s4 1934713408
    %v2119 = vunpack.c.0.s8 %v2118
    %v2120 = vlaneseq
    %v2121 = vshrl.u32 %v2120, 7
    %v2122 = vsub.s32 %v2119, %v2121
    %v2123 = vrot.slane %v2109, %v2122
    %v2124 = vcombine.high %v2116, 0
    %v2125 = vcombine.high %v2123, 0
    %v2126 = vcombine.low %v932, %v948
    %v2128 = vunpack.c.l.s4 1983009808
    %v2129 = vunpack.c.0.s8 %v2128
    %v2130 = vlaneseq
    %v2131 = vshrl.u32 %v2130, 7
    %v2132 = vsub.s32 %v2129, %v2131
    %v2133 = vrot.slane %v2126, %v2132
    %v2134 = vcombine.low %v940, %v956
    %v2136 = vunpack.c.l.s4 1983009808
    %v2137 = vunpack.c.0.s8 %v2136
    %v2138 = vlaneseq
    %v2139 = vshrl.u32 %v2138, 7
    %v2140 = vsub.s32 %v2137, %v2139
    %v2141 = vrot.slane %v2134, %v2140
    %v2142 = vcombine.low %v2133, %v2141
    %v2143 = vcombine.high %v2133, %v2141
    %v2145 = vunpack.c.l.s4 1934713408
    %v2146 = vunpack.c.0.s8 %v2145
    %v2147 = vlaneseq
    %v2148 = vshrl.u32 %v2147, 7
    %v2149 = vsub.s32 %v2146, %v2148
    %v2150 = vrot.slane %v2142, %v2149
    %v2152 = vunpack.c.l.s4 1934713408
    %v2153 = vunpack.c.0.s8 %v2152
    %v2154 = vlaneseq
    %v2155 = vshrl.u32 %v2154, 7
    %v2156 = vsub.s32 %v2153, %v2155
    %v2157 = vrot.slane %v2143, %v2156
    %v2158 = vcombine.high %v2150, 0
    %v2159 = vcombine.high %v2157, 0
    %v2160 = vcombine.low %v936, %v952
    %v2162 = vunpack.c.l.s4 1983009808
    %v2163 = vunpack.c.0.s8 %v2162
    %v2164 = vlaneseq
    %v2165 = vshrl.u32 %v2164, 7
    %v2166 = vsub.s32 %v2163, %v2165
    %v2167 = vrot.slane %v2160, %v2166
    %v2168 = vcombine.low %v944, %v960
    %v2170 = vunpack.c.l.s4 1983009808
    %v2171 = vunpack.c.0.s8 %v2170
    %v2172 = vlaneseq
    %v2173 = vshrl.u32 %v2172, 7
    %v2174 = vsub.s32 %v2171, %v2173
    %v2175 = vrot.slane %v2168, %v2174
    %v2176 = vcombine.low %v2167, %v2175
    %v2177 = vcombine.high %v2167, %v2175
    %v2179 = vunpack.c.l.s4 1934713408
    %v2180 = vunpack.c.0.s8 %v2179
    %v2181 = vlaneseq
    %v2182 = vshrl.u32 %v2181, 7
    %v2183 = vsub.s32 %v2180, %v2182
    %v2184 = vrot.slane %v2176, %v2183
    %v2186 = vunpack.c.l.s4 1934713408
    %v2187 = vunpack.c.0.s8 %v2186
    %v2188 = vlaneseq
    %v2189 = vshrl.u32 %v2188, 7
    %v2190 = vsub.s32 %v2187, %v2189
    %v2191 = vrot.slane %v2177, %v2190
    %v2192 = vcombine.high %v2184, 0
    %v2193 = vcombine.high %v2191, 0
    %v2194 = vcombine.low %v964, %v980
    %v2196 = vunpack.c.l.s4 1983009808
    %v2197 = vunpack.c.0.s8 %v2196
    %v2198 = vlaneseq
    %v2199 = vshrl.u32 %v2198, 7
    %v2200 = vsub.s32 %v2197, %v2199
    %v2201 = vrot.slane %v2194, %v2200
    %v2202 = vcombine.low %v972, %v988
    %v2204 = vunpack.c.l.s4 1983009808
    %v2205 = vunpack.c.0.s8 %v2204
    %v2206 = vlaneseq
    %v2207 = vshrl.u32 %v2206, 7
    %v2208 = vsub.s32 %v2205, %v2207
    %v2209 = vrot.slane %v2202, %v2208
    %v2210 = vcombine.low %v2201, %v2209
    %v2211 = vcombine.high %v2201, %v2209
    %v2213 = vunpack.c.l.s4 1934713408
    %v2214 = vunpack.c.0.s8 %v2213
    %v2215 = vlaneseq
    %v2216 = vshrl.u32 %v2215, 7
    %v2217 = vsub.s32 %v2214, %v2216
    %v2218 = vrot.slane %v2210, %v2217
    %v2220 = vunpack.c.l.s4 1934713408
    %v2221 = vunpack.c.0.s8 %v2220
    %v2222 = vlaneseq
    %v2223 = vshrl.u32 %v2222, 7
    %v2224 = vsub.s32 %v2221, %v2223
    %v2225 = vrot.slane %v2211, %v2224
    %v2226 = vcombine.high %v2218, 0
    %v2227 = vcombine.high %v2225, 0
    %v2228 = vcombine.low %v968, %v984
    %v2230 = vunpack.c.l.s4 1983009808
    %v2231 = vunpack.c.0.s8 %v2230
    %v2232 = vlaneseq
    %v2233 = vshrl.u32 %v2232, 7
    %v2234 = vsub.s32 %v2231, %v2233
    %v2235 = vrot.slane %v2228, %v2234
    %v2236 = vcombine.low %v976, %v992
    %v2238 = vunpack.c.l.s4 1983009808
    %v2239 = vunpack.c.0.s8 %v2238
    %v2240 = vlaneseq
    %v2241 = vshrl.u32 %v2240, 7
    %v2242 = vsub.s32 %v2239, %v2241
    %v2243 = vrot.slane %v2236, %v2242
    %v2244 = vcombine.low %v2235, %v2243
    %v2245 = vcombine.high %v2235, %v2243
    %v2247 = vunpack.c.l.s4 1934713408
    %v2248 = vunpack.c.0.s8 %v2247
    %v2249 = vlaneseq
    %v2250 = vshrl.u32 %v2249, 7
    %v2251 = vsub.s32 %v2248, %v2250
    %v2252 = vrot.slane %v2244, %v2251
    %v2254 = vunpack.c.l.s4 1934713408
    %v2255 = vunpack.c.0.s8 %v2254
    %v2256 = vlaneseq
    %v2257 = vshrl.u32 %v2256, 7
    %v2258 = vsub.s32 %v2255, %v2257
    %v2259 = vrot.slane %v2245, %v2258
    %v2260 = vcombine.high %v2252, 0
    %v2261 = vcombine.high %v2259, 0
    %v2262 = vcombine.low %v996, %v1012
    %v2264 = vunpack.c.l.s4 1983009808
    %v2265 = vunpack.c.0.s8 %v2264
    %v2266 = vlaneseq
    %v2267 = vshrl.u32 %v2266, 7
    %v2268 = vsub.s32 %v2265, %v2267
    %v2269 = vrot.slane %v2262, %v2268
    %v2270 = vcombine.low %v1004, %v1020
    %v2272 = vunpack.c.l.s4 1983009808
    %v2273 = vunpack.c.0.s8 %v2272
    %v2274 = vlaneseq
    %v2275 = vshrl.u32 %v2274, 7
    %v2276 = vsub.s32 %v2273, %v2275
    %v2277 = vrot.slane %v2270, %v2276
    %v2278 = vcombine.low %v2269, %v2277
    %v2279 = vcombine.high %v2269, %v2277
    %v2281 = vunpack.c.l.s4 1934713408
    %v2282 = vunpack.c.0.s8 %v2281
    %v2283 = vlaneseq
    %v2284 = vshrl.u32 %v2283, 7
    %v2285 = vsub.s32 %v2282, %v2284
    %v2286 = vrot.slane %v2278, %v2285
    %v2288 = vunpack.c.l.s4 1934713408
    %v2289 = vunpack.c.0.s8 %v2288
    %v2290 = vlaneseq
    %v2291 = vshrl.u32 %v2290, 7
    %v2292 = vsub.s32 %v2289, %v2291
    %v2293 = vrot.slane %v2279, %v2292
    %v2294 = vcombine.high %v2286, 0
    %v2295 = vcombine.high %v2293, 0
    %v2296 = vcombine.low %v1000, %v1016
    %v2298 = vunpack.c.l.s4 1983009808
    %v2299 = vunpack.c.0.s8 %v2298
    %v2300 = vlaneseq
    %v2301 = vshrl.u32 %v2300, 7
    %v2302 = vsub.s32 %v2299, %v2301
    %v2303 = vrot.slane %v2296, %v2302
    %v2304 = vcombine.low %v1008, %v1024
    %v2306 = vunpack.c.l.s4 1983009808
    %v2307 = vunpack.c.0.s8 %v2306
    %v2308 = vlaneseq
    %v2309 = vshrl.u32 %v2308, 7
    %v2310 = vsub.s32 %v2307, %v2309
    %v2311 = vrot.slane %v2304, %v2310
    %v2312 = vcombine.low %v2303, %v2311
    %v2313 = vcombine.high %v2303, %v2311
    %v2315 = vunpack.c.l.s4 1934713408
    %v2316 = vunpack.c.0.s8 %v2315
    %v2317 = vlaneseq
    %v2318 = vshrl.u32 %v2317, 7
    %v2319 = vsub.s32 %v2316, %v2318
    %v2320 = vrot.slane %v2312, %v2319
    %v2322 = vunpack.c.l.s4 1934713408
    %v2323 = vunpack.c.0.s8 %v2322
    %v2324 = vlaneseq
    %v2325 = vshrl.u32 %v2324, 7
    %v2326 = vsub.s32 %v2323, %v2325
    %v2327 = vrot.slane %v2313, %v2326
    %v2328 = vcombine.high %v2320, 0
    %v2329 = vcombine.high %v2327, 0
    %v2332 = vunpack.c.l.s4 1983009808
    %v2333 = vunpack.c.0.s8 %v2332
    %v2334 = vlaneseq
    %v2335 = vshrl.u32 %v2334, 7
    %v2336 = vsub.s32 %v2333, %v2335
    %v2337 = vrot.slane %v1028, %v2336
    %v2340 = vunpack.c.l.s4 1983009808
    %v2341 = vunpack.c.0.s8 %v2340
    %v2342 = vlaneseq
    %v2343 = vshrl.u32 %v2342, 7
    %v2344 = vsub.s32 %v2341, %v2343
    %v2345 = vrot.slane %v1034, %v2344
    %v2346 = vcombine.low %v2337, %v2345
    %v2347 = vcombine.high %v2337, %v2345
    %v2349 = vunpack.c.l.s4 1934713408
    %v2350 = vunpack.c.0.s8 %v2349
    %v2351 = vlaneseq
    %v2352 = vshrl.u32 %v2351, 7
    %v2353 = vsub.s32 %v2350, %v2352
    %v2354 = vrot.slane %v2346, %v2353
    %v2356 = vunpack.c.l.s4 1934713408
    %v2357 = vunpack.c.0.s8 %v2356
    %v2358 = vlaneseq
    %v2359 = vshrl.u32 %v2358, 7
    %v2360 = vsub.s32 %v2357, %v2359
    %v2361 = vrot.slane %v2347, %v2360
    %v2362 = vcombine.high %v2354, 0
    %v2363 = vcombine.high %v2361, 0
    %v2366 = vunpack.c.l.s4 1983009808
    %v2367 = vunpack.c.0.s8 %v2366
    %v2368 = vlaneseq
    %v2369 = vshrl.u32 %v2368, 7
    %v2370 = vsub.s32 %v2367, %v2369
    %v2371 = vrot.slane %v1031, %v2370
    %v2374 = vunpack.c.l.s4 1983009808
    %v2375 = vunpack.c.0.s8 %v2374
    %v2376 = vlaneseq
    %v2377 = vshrl.u32 %v2376, 7
    %v2378 = vsub.s32 %v2375, %v2377
    %v2379 = vrot.slane %v1037, %v2378
    %v2380 = vcombine.low %v2371, %v2379
    %v2381 = vcombine.high %v2371, %v2379
    %v2383 = vunpack.c.l.s4 1934713408
    %v2384 = vunpack.c.0.s8 %v2383
    %v2385 = vlaneseq
    %v2386 = vshrl.u32 %v2385, 7
    %v2387 = vsub.s32 %v2384, %v2386
    %v2388 = vrot.slane %v2380, %v2387
    %v2390 = vunpack.c.l.s4 1934713408
    %v2391 = vunpack.c.0.s8 %v2390
    %v2392 = vlaneseq
    %v2393 = vshrl.u32 %v2392, 7
    %v2394 = vsub.s32 %v2391, %v2393
    %v2395 = vrot.slane %v2381, %v2394
    %v2396 = vcombine.high %v2388, 0
    %v2397 = vcombine.high %v2395, 0
    %v2408 = vunpack.c.l.b16 %v1062
    %v2409 = vunpack.c.l.b16 %v1130
    %v2410 = vunpack.c.l.b16 %v1198
    %v2411 = vunpack.c.l.b16 %v1266
    %v2412 = vunpack.c.l.b16 %v1334
    %v2413 = vunpack.c.l.b16 %v1742
    %v2414 = vunpack.c.l.b16 %v1810
    %v2415 = vunpack.c.l.b16 %v1878
    %v2416 = vunpack.c.l.b16 %v1946
    %v2417 = vunpack.c.l.b16 %v2014
    %v2418 = vpack.c.b16 %v2409, %v2408
    %v2419 = vpack.c.b16 %v2411, %v2410
    %v2420 = vpack.c.b16 %v2412, %v2412
    %v2421 = vpack.c.b16 %v2414, %v2413
    %v2422 = vpack.c.b16 %v2416, %v2415
    %v2423 = vpack.c.b16 %v2417, %v2417
    %v2434 = vunpack.c.l.b16 %v1096
    %v2435 = vunpack.c.l.b16 %v1164
    %v2436 = vunpack.c.l.b16 %v1232
    %v2437 = vunpack.c.l.b16 %v1300
    %v2438 = vunpack.c.l.b16 %v1368
    %v2439 = vunpack.c.l.b16 %v1776
    %v2440 = vunpack.c.l.b16 %v1844
    %v2441 = vunpack.c.l.b16 %v1912
    %v2442 = vunpack.c.l.b16 %v1980
    %v2443 = vunpack.c.l.b16 %v2048
    %v2444 = vpack.c.b16 %v2435, %v2434
    %v2445 = vpack.c.b16 %v2437, %v2436
    %v2446 = vpack.c.b16 %v2438, %v2438
    %v2447 = vpack.c.b16 %v2440, %v2439
    %v2448 = vpack.c.b16 %v2442, %v2441
    %v2449 = vpack.c.b16 %v2443, %v2443
    %2450 = vrot.lane.b32.xlu0 %v2444, 16
    %v2451 = vpop.permute.xlu0 %2450
    %2452 = vrot.lane.b32.xlu0 %v2445, 16
    %v2453 = vpop.permute.xlu0 %2452
    %2454 = vrot.lane.b32.xlu0 %v2446, 16
    %v2455 = vpop.permute.xlu0 %2454
    %2456 = vrot.lane.b32.xlu0 %v2447, 16
    %v2457 = vpop.permute.xlu0 %2456
    %2458 = vrot.lane.b32.xlu0 %v2448, 16
    %v2459 = vpop.permute.xlu0 %2458
    %2460 = vrot.lane.b32.xlu0 %v2449, 16
    %v2461 = vpop.permute.xlu0 %2460
    %v2472 = vunpack.c.l.b16 %v1070
    %v2473 = vunpack.c.l.b16 %v1138
    %v2474 = vunpack.c.l.b16 %v1206
    %v2475 = vunpack.c.l.b16 %v1274
    %v2476 = vunpack.c.l.b16 %v1342
    %v2477 = vunpack.c.l.b16 %v1750
    %v2478 = vunpack.c.l.b16 %v1818
    %v2479 = vunpack.c.l.b16 %v1886
    %v2480 = vunpack.c.l.b16 %v1954
    %v2481 = vunpack.c.l.b16 %v2022
    %v2482 = vpack.c.b16 %v2473, %v2472
    %v2483 = vpack.c.b16 %v2475, %v2474
    %v2484 = vpack.c.b16 %v2476, %v2476
    %v2485 = vpack.c.b16 %v2478, %v2477
    %v2486 = vpack.c.b16 %v2480, %v2479
    %v2487 = vpack.c.b16 %v2481, %v2481
    %2488 = vrot.lane.b32.xlu0 %v2482, 32
    %v2489 = vpop.permute.xlu0 %2488
    %2490 = vrot.lane.b32.xlu0 %v2483, 32
    %v2491 = vpop.permute.xlu0 %2490
    %2492 = vrot.lane.b32.xlu0 %v2484, 32
    %v2493 = vpop.permute.xlu0 %2492
    %2494 = vrot.lane.b32.xlu0 %v2485, 32
    %v2495 = vpop.permute.xlu0 %2494
    %2496 = vrot.lane.b32.xlu0 %v2486, 32
    %v2497 = vpop.permute.xlu0 %2496
    %2498 = vrot.lane.b32.xlu0 %v2487, 32
    %v2499 = vpop.permute.xlu0 %2498
    %v2510 = vunpack.c.l.b16 %v1104
    %v2511 = vunpack.c.l.b16 %v1172
    %v2512 = vunpack.c.l.b16 %v1240
    %v2513 = vunpack.c.l.b16 %v1308
    %v2514 = vunpack.c.l.b16 %v1376
    %v2515 = vunpack.c.l.b16 %v1784
    %v2516 = vunpack.c.l.b16 %v1852
    %v2517 = vunpack.c.l.b16 %v1920
    %v2518 = vunpack.c.l.b16 %v1988
    %v2519 = vunpack.c.l.b16 %v2056
    %v2520 = vpack.c.b16 %v2511, %v2510
    %v2521 = vpack.c.b16 %v2513, %v2512
    %v2522 = vpack.c.b16 %v2514, %v2514
    %v2523 = vpack.c.b16 %v2516, %v2515
    %v2524 = vpack.c.b16 %v2518, %v2517
    %v2525 = vpack.c.b16 %v2519, %v2519
    %2526 = vrot.lane.b32.xlu0 %v2520, 48
    %v2527 = vpop.permute.xlu0 %2526
    %2528 = vrot.lane.b32.xlu0 %v2521, 48
    %v2529 = vpop.permute.xlu0 %2528
    %2530 = vrot.lane.b32.xlu0 %v2522, 48
    %v2531 = vpop.permute.xlu0 %2530
    %2532 = vrot.lane.b32.xlu0 %v2523, 48
    %v2533 = vpop.permute.xlu0 %2532
    %2534 = vrot.lane.b32.xlu0 %v2524, 48
    %v2535 = vpop.permute.xlu0 %2534
    %2536 = vrot.lane.b32.xlu0 %v2525, 48
    %v2537 = vpop.permute.xlu0 %2536
    %v2548 = vunpack.c.l.b16 %v1069
    %v2549 = vunpack.c.l.b16 %v1137
    %v2550 = vunpack.c.l.b16 %v1205
    %v2551 = vunpack.c.l.b16 %v1273
    %v2552 = vunpack.c.l.b16 %v1341
    %v2553 = vunpack.c.l.b16 %v1749
    %v2554 = vunpack.c.l.b16 %v1817
    %v2555 = vunpack.c.l.b16 %v1885
    %v2556 = vunpack.c.l.b16 %v1953
    %v2557 = vunpack.c.l.b16 %v2021
    %v2558 = vpack.c.b16 %v2549, %v2548
    %v2559 = vpack.c.b16 %v2551, %v2550
    %v2560 = vpack.c.b16 %v2552, %v2552
    %v2561 = vpack.c.b16 %v2554, %v2553
    %v2562 = vpack.c.b16 %v2556, %v2555
    %v2563 = vpack.c.b16 %v2557, %v2557
    %2564 = vrot.lane.b32.xlu0 %v2558, 64
    %v2565 = vpop.permute.xlu0 %2564
    %2566 = vrot.lane.b32.xlu0 %v2559, 64
    %v2567 = vpop.permute.xlu0 %2566
    %2568 = vrot.lane.b32.xlu0 %v2560, 64
    %v2569 = vpop.permute.xlu0 %2568
    %2570 = vrot.lane.b32.xlu0 %v2561, 64
    %v2571 = vpop.permute.xlu0 %2570
    %2572 = vrot.lane.b32.xlu0 %v2562, 64
    %v2573 = vpop.permute.xlu0 %2572
    %2574 = vrot.lane.b32.xlu0 %v2563, 64
    %v2575 = vpop.permute.xlu0 %2574
    %v2586 = vunpack.c.l.b16 %v1103
    %v2587 = vunpack.c.l.b16 %v1171
    %v2588 = vunpack.c.l.b16 %v1239
    %v2589 = vunpack.c.l.b16 %v1307
    %v2590 = vunpack.c.l.b16 %v1375
    %v2591 = vunpack.c.l.b16 %v1783
    %v2592 = vunpack.c.l.b16 %v1851
    %v2593 = vunpack.c.l.b16 %v1919
    %v2594 = vunpack.c.l.b16 %v1987
    %v2595 = vunpack.c.l.b16 %v2055
    %v2596 = vpack.c.b16 %v2587, %v2586
    %v2597 = vpack.c.b16 %v2589, %v2588
    %v2598 = vpack.c.b16 %v2590, %v2590
    %v2599 = vpack.c.b16 %v2592, %v2591
    %v2600 = vpack.c.b16 %v2594, %v2593
    %v2601 = vpack.c.b16 %v2595, %v2595
    %2602 = vrot.lane.b32.xlu0 %v2596, 80
    %v2603 = vpop.permute.xlu0 %2602
    %2604 = vrot.lane.b32.xlu0 %v2597, 80
    %v2605 = vpop.permute.xlu0 %2604
    %2606 = vrot.lane.b32.xlu0 %v2598, 80
    %v2607 = vpop.permute.xlu0 %2606
    %2608 = vrot.lane.b32.xlu0 %v2599, 80
    %v2609 = vpop.permute.xlu0 %2608
    %2610 = vrot.lane.b32.xlu0 %v2600, 80
    %v2611 = vpop.permute.xlu0 %2610
    %2612 = vrot.lane.b32.xlu0 %v2601, 80
    %v2613 = vpop.permute.xlu0 %2612
    %v2624 = vunpack.c.l.b16 %v1071
    %v2625 = vunpack.c.l.b16 %v1139
    %v2626 = vunpack.c.l.b16 %v1207
    %v2627 = vunpack.c.l.b16 %v1275
    %v2628 = vunpack.c.l.b16 %v1343
    %v2629 = vunpack.c.l.b16 %v1751
    %v2630 = vunpack.c.l.b16 %v1819
    %v2631 = vunpack.c.l.b16 %v1887
    %v2632 = vunpack.c.l.b16 %v1955
    %v2633 = vunpack.c.l.b16 %v2023
    %v2634 = vpack.c.b16 %v2625, %v2624
    %v2635 = vpack.c.b16 %v2627, %v2626
    %v2636 = vpack.c.b16 %v2628, %v2628
    %v2637 = vpack.c.b16 %v2630, %v2629
    %v2638 = vpack.c.b16 %v2632, %v2631
    %v2639 = vpack.c.b16 %v2633, %v2633
    %2640 = vrot.lane.b32.xlu0 %v2634, 96
    %v2641 = vpop.permute.xlu0 %2640
    %2642 = vrot.lane.b32.xlu0 %v2635, 96
    %v2643 = vpop.permute.xlu0 %2642
    %2644 = vrot.lane.b32.xlu0 %v2636, 96
    %v2645 = vpop.permute.xlu0 %2644
    %2646 = vrot.lane.b32.xlu0 %v2637, 96
    %v2647 = vpop.permute.xlu0 %2646
    %2648 = vrot.lane.b32.xlu0 %v2638, 96
    %v2649 = vpop.permute.xlu0 %2648
    %2650 = vrot.lane.b32.xlu0 %v2639, 96
    %v2651 = vpop.permute.xlu0 %2650
    %v2662 = vunpack.c.l.b16 %v1105
    %v2663 = vunpack.c.l.b16 %v1173
    %v2664 = vunpack.c.l.b16 %v1241
    %v2665 = vunpack.c.l.b16 %v1309
    %v2666 = vunpack.c.l.b16 %v1377
    %v2667 = vunpack.c.l.b16 %v1785
    %v2668 = vunpack.c.l.b16 %v1853
    %v2669 = vunpack.c.l.b16 %v1921
    %v2670 = vunpack.c.l.b16 %v1989
    %v2671 = vunpack.c.l.b16 %v2057
    %v2672 = vpack.c.b16 %v2663, %v2662
    %v2673 = vpack.c.b16 %v2665, %v2664
    %v2674 = vpack.c.b16 %v2666, %v2666
    %v2675 = vpack.c.b16 %v2668, %v2667
    %v2676 = vpack.c.b16 %v2670, %v2669
    %v2677 = vpack.c.b16 %v2671, %v2671
    %2678 = vrot.lane.b32.xlu0 %v2672, 112
    %v2679 = vpop.permute.xlu0 %2678
    %2680 = vrot.lane.b32.xlu0 %v2673, 112
    %v2681 = vpop.permute.xlu0 %2680
    %2682 = vrot.lane.b32.xlu0 %v2674, 112
    %v2683 = vpop.permute.xlu0 %2682
    %2684 = vrot.lane.b32.xlu0 %v2675, 112
    %v2685 = vpop.permute.xlu0 %2684
    %2686 = vrot.lane.b32.xlu0 %v2676, 112
    %v2687 = vpop.permute.xlu0 %2686
    %2688 = vrot.lane.b32.xlu0 %v2677, 112
    %v2689 = vpop.permute.xlu0 %2688
    %v2700 = vunpack.c.l.b16 %v1402
    %v2701 = vunpack.c.l.b16 %v1470
    %v2702 = vunpack.c.l.b16 %v1538
    %v2703 = vunpack.c.l.b16 %v1606
    %v2704 = vunpack.c.l.b16 %v1674
    %v2705 = vunpack.c.l.b16 %v2082
    %v2706 = vunpack.c.l.b16 %v2150
    %v2707 = vunpack.c.l.b16 %v2218
    %v2708 = vunpack.c.l.b16 %v2286
    %v2709 = vunpack.c.l.b16 %v2354
    %v2710 = vpack.c.b16 %v2701, %v2700
    %v2711 = vpack.c.b16 %v2703, %v2702
    %v2712 = vpack.c.b16 %v2704, %v2704
    %v2713 = vpack.c.b16 %v2706, %v2705
    %v2714 = vpack.c.b16 %v2708, %v2707
    %v2715 = vpack.c.b16 %v2709, %v2709
    %v2726 = vunpack.c.l.b16 %v1436
    %v2727 = vunpack.c.l.b16 %v1504
    %v2728 = vunpack.c.l.b16 %v1572
    %v2729 = vunpack.c.l.b16 %v1640
    %v2730 = vunpack.c.l.b16 %v1708
    %v2731 = vunpack.c.l.b16 %v2116
    %v2732 = vunpack.c.l.b16 %v2184
    %v2733 = vunpack.c.l.b16 %v2252
    %v2734 = vunpack.c.l.b16 %v2320
    %v2735 = vunpack.c.l.b16 %v2388
    %v2736 = vpack.c.b16 %v2727, %v2726
    %v2737 = vpack.c.b16 %v2729, %v2728
    %v2738 = vpack.c.b16 %v2730, %v2730
    %v2739 = vpack.c.b16 %v2732, %v2731
    %v2740 = vpack.c.b16 %v2734, %v2733
    %v2741 = vpack.c.b16 %v2735, %v2735
    %2742 = vrot.lane.b32.xlu0 %v2736, 16
    %v2743 = vpop.permute.xlu0 %2742
    %2744 = vrot.lane.b32.xlu0 %v2737, 16
    %v2745 = vpop.permute.xlu0 %2744
    %2746 = vrot.lane.b32.xlu0 %v2738, 16
    %v2747 = vpop.permute.xlu0 %2746
    %2748 = vrot.lane.b32.xlu0 %v2739, 16
    %v2749 = vpop.permute.xlu0 %2748
    %2750 = vrot.lane.b32.xlu0 %v2740, 16
    %v2751 = vpop.permute.xlu0 %2750
    %2752 = vrot.lane.b32.xlu0 %v2741, 16
    %v2753 = vpop.permute.xlu0 %2752
    %v2764 = vunpack.c.l.b16 %v1410
    %v2765 = vunpack.c.l.b16 %v1478
    %v2766 = vunpack.c.l.b16 %v1546
    %v2767 = vunpack.c.l.b16 %v1614
    %v2768 = vunpack.c.l.b16 %v1682
    %v2769 = vunpack.c.l.b16 %v2090
    %v2770 = vunpack.c.l.b16 %v2158
    %v2771 = vunpack.c.l.b16 %v2226
    %v2772 = vunpack.c.l.b16 %v2294
    %v2773 = vunpack.c.l.b16 %v2362
    %v2774 = vpack.c.b16 %v2765, %v2764
    %v2775 = vpack.c.b16 %v2767, %v2766
    %v2776 = vpack.c.b16 %v2768, %v2768
    %v2777 = vpack.c.b16 %v2770, %v2769
    %v2778 = vpack.c.b16 %v2772, %v2771
    %v2779 = vpack.c.b16 %v2773, %v2773
    %2780 = vrot.lane.b32.xlu0 %v2774, 32
    %v2781 = vpop.permute.xlu0 %2780
    %2782 = vrot.lane.b32.xlu0 %v2775, 32
    %v2783 = vpop.permute.xlu0 %2782
    %2784 = vrot.lane.b32.xlu0 %v2776, 32
    %v2785 = vpop.permute.xlu0 %2784
    %2786 = vrot.lane.b32.xlu0 %v2777, 32
    %v2787 = vpop.permute.xlu0 %2786
    %2788 = vrot.lane.b32.xlu0 %v2778, 32
    %v2789 = vpop.permute.xlu0 %2788
    %2790 = vrot.lane.b32.xlu0 %v2779, 32
    %v2791 = vpop.permute.xlu0 %2790
    %v2802 = vunpack.c.l.b16 %v1444
    %v2803 = vunpack.c.l.b16 %v1512
    %v2804 = vunpack.c.l.b16 %v1580
    %v2805 = vunpack.c.l.b16 %v1648
    %v2806 = vunpack.c.l.b16 %v1716
    %v2807 = vunpack.c.l.b16 %v2124
    %v2808 = vunpack.c.l.b16 %v2192
    %v2809 = vunpack.c.l.b16 %v2260
    %v2810 = vunpack.c.l.b16 %v2328
    %v2811 = vunpack.c.l.b16 %v2396
    %v2812 = vpack.c.b16 %v2803, %v2802
    %v2813 = vpack.c.b16 %v2805, %v2804
    %v2814 = vpack.c.b16 %v2806, %v2806
    %v2815 = vpack.c.b16 %v2808, %v2807
    %v2816 = vpack.c.b16 %v2810, %v2809
    %v2817 = vpack.c.b16 %v2811, %v2811
    %2818 = vrot.lane.b32.xlu0 %v2812, 48
    %v2819 = vpop.permute.xlu0 %2818
    %2820 = vrot.lane.b32.xlu0 %v2813, 48
    %v2821 = vpop.permute.xlu0 %2820
    %2822 = vrot.lane.b32.xlu0 %v2814, 48
    %v2823 = vpop.permute.xlu0 %2822
    %2824 = vrot.lane.b32.xlu0 %v2815, 48
    %v2825 = vpop.permute.xlu0 %2824
    %2826 = vrot.lane.b32.xlu0 %v2816, 48
    %v2827 = vpop.permute.xlu0 %2826
    %2828 = vrot.lane.b32.xlu0 %v2817, 48
    %v2829 = vpop.permute.xlu0 %2828
    %v2840 = vunpack.c.l.b16 %v1409
    %v2841 = vunpack.c.l.b16 %v1477
    %v2842 = vunpack.c.l.b16 %v1545
    %v2843 = vunpack.c.l.b16 %v1613
    %v2844 = vunpack.c.l.b16 %v1681
    %v2845 = vunpack.c.l.b16 %v2089
    %v2846 = vunpack.c.l.b16 %v2157
    %v2847 = vunpack.c.l.b16 %v2225
    %v2848 = vunpack.c.l.b16 %v2293
    %v2849 = vunpack.c.l.b16 %v2361
    %v2850 = vpack.c.b16 %v2841, %v2840
    %v2851 = vpack.c.b16 %v2843, %v2842
    %v2852 = vpack.c.b16 %v2844, %v2844
    %v2853 = vpack.c.b16 %v2846, %v2845
    %v2854 = vpack.c.b16 %v2848, %v2847
    %v2855 = vpack.c.b16 %v2849, %v2849
    %2856 = vrot.lane.b32.xlu0 %v2850, 64
    %v2857 = vpop.permute.xlu0 %2856
    %2858 = vrot.lane.b32.xlu0 %v2851, 64
    %v2859 = vpop.permute.xlu0 %2858
    %2860 = vrot.lane.b32.xlu0 %v2852, 64
    %v2861 = vpop.permute.xlu0 %2860
    %2862 = vrot.lane.b32.xlu0 %v2853, 64
    %v2863 = vpop.permute.xlu0 %2862
    %2864 = vrot.lane.b32.xlu0 %v2854, 64
    %v2865 = vpop.permute.xlu0 %2864
    %2866 = vrot.lane.b32.xlu0 %v2855, 64
    %v2867 = vpop.permute.xlu0 %2866
    %v2878 = vunpack.c.l.b16 %v1443
    %v2879 = vunpack.c.l.b16 %v1511
    %v2880 = vunpack.c.l.b16 %v1579
    %v2881 = vunpack.c.l.b16 %v1647
    %v2882 = vunpack.c.l.b16 %v1715
    %v2883 = vunpack.c.l.b16 %v2123
    %v2884 = vunpack.c.l.b16 %v2191
    %v2885 = vunpack.c.l.b16 %v2259
    %v2886 = vunpack.c.l.b16 %v2327
    %v2887 = vunpack.c.l.b16 %v2395
    %v2888 = vpack.c.b16 %v2879, %v2878
    %v2889 = vpack.c.b16 %v2881, %v2880
    %v2890 = vpack.c.b16 %v2882, %v2882
    %v2891 = vpack.c.b16 %v2884, %v2883
    %v2892 = vpack.c.b16 %v2886, %v2885
    %v2893 = vpack.c.b16 %v2887, %v2887
    %2894 = vrot.lane.b32.xlu0 %v2888, 80
    %v2895 = vpop.permute.xlu0 %2894
    %2896 = vrot.lane.b32.xlu0 %v2889, 80
    %v2897 = vpop.permute.xlu0 %2896
    %2898 = vrot.lane.b32.xlu0 %v2890, 80
    %v2899 = vpop.permute.xlu0 %2898
    %2900 = vrot.lane.b32.xlu0 %v2891, 80
    %v2901 = vpop.permute.xlu0 %2900
    %2902 = vrot.lane.b32.xlu0 %v2892, 80
    %v2903 = vpop.permute.xlu0 %2902
    %2904 = vrot.lane.b32.xlu0 %v2893, 80
    %v2905 = vpop.permute.xlu0 %2904
    %v2916 = vunpack.c.l.b16 %v1411
    %v2917 = vunpack.c.l.b16 %v1479
    %v2918 = vunpack.c.l.b16 %v1547
    %v2919 = vunpack.c.l.b16 %v1615
    %v2920 = vunpack.c.l.b16 %v1683
    %v2921 = vunpack.c.l.b16 %v2091
    %v2922 = vunpack.c.l.b16 %v2159
    %v2923 = vunpack.c.l.b16 %v2227
    %v2924 = vunpack.c.l.b16 %v2295
    %v2925 = vunpack.c.l.b16 %v2363
    %v2926 = vpack.c.b16 %v2917, %v2916
    %v2927 = vpack.c.b16 %v2919, %v2918
    %v2928 = vpack.c.b16 %v2920, %v2920
    %v2929 = vpack.c.b16 %v2922, %v2921
    %v2930 = vpack.c.b16 %v2924, %v2923
    %v2931 = vpack.c.b16 %v2925, %v2925
    %2932 = vrot.lane.b32.xlu0 %v2926, 96
    %v2933 = vpop.permute.xlu0 %2932
    %2934 = vrot.lane.b32.xlu0 %v2927, 96
    %v2935 = vpop.permute.xlu0 %2934
    %2936 = vrot.lane.b32.xlu0 %v2928, 96
    %v2937 = vpop.permute.xlu0 %2936
    %2938 = vrot.lane.b32.xlu0 %v2929, 96
    %v2939 = vpop.permute.xlu0 %2938
    %2940 = vrot.lane.b32.xlu0 %v2930, 96
    %v2941 = vpop.permute.xlu0 %2940
    %2942 = vrot.lane.b32.xlu0 %v2931, 96
    %v2943 = vpop.permute.xlu0 %2942
    %v2954 = vunpack.c.l.b16 %v1445
    %v2955 = vunpack.c.l.b16 %v1513
    %v2956 = vunpack.c.l.b16 %v1581
    %v2957 = vunpack.c.l.b16 %v1649
    %v2958 = vunpack.c.l.b16 %v1717
    %v2959 = vunpack.c.l.b16 %v2125
    %v2960 = vunpack.c.l.b16 %v2193
    %v2961 = vunpack.c.l.b16 %v2261
    %v2962 = vunpack.c.l.b16 %v2329
    %v2963 = vunpack.c.l.b16 %v2397
    %v2964 = vpack.c.b16 %v2955, %v2954
    %v2965 = vpack.c.b16 %v2957, %v2956
    %v2966 = vpack.c.b16 %v2958, %v2958
    %v2967 = vpack.c.b16 %v2960, %v2959
    %v2968 = vpack.c.b16 %v2962, %v2961
    %v2969 = vpack.c.b16 %v2963, %v2963
    %2970 = vrot.lane.b32.xlu0 %v2964, 112
    %v2971 = vpop.permute.xlu0 %2970
    %2972 = vrot.lane.b32.xlu0 %v2965, 112
    %v2973 = vpop.permute.xlu0 %2972
    %2974 = vrot.lane.b32.xlu0 %v2966, 112
    %v2975 = vpop.permute.xlu0 %2974
    %2976 = vrot.lane.b32.xlu0 %v2967, 112
    %v2977 = vpop.permute.xlu0 %2976
    %2978 = vrot.lane.b32.xlu0 %v2968, 112
    %v2979 = vpop.permute.xlu0 %2978
    %2980 = vrot.lane.b32.xlu0 %v2969, 112
    %v2981 = vpop.permute.xlu0 %2980
    %vm2982 = vcmask 130048
    %v2985 = vsel %vm2982, %v2418, %v2451
    %v2988 = vsel %vm2982, %v2419, %v2453
    %v2991 = vsel %vm2982, %v2420, %v2455
    %v2994 = vsel %vm2982, %v2421, %v2457
    %v2997 = vsel %vm2982, %v2422, %v2459
    %v3000 = vsel %vm2982, %v2423, %v2461
    %vm3001 = vcmask 261120
    %v3003 = vsel %vm3001, %v2985, %v2489
    %v3005 = vsel %vm3001, %v2988, %v2491
    %v3007 = vsel %vm3001, %v2991, %v2493
    %v3009 = vsel %vm3001, %v2994, %v2495
    %v3011 = vsel %vm3001, %v2997, %v2497
    %v3013 = vsel %vm3001, %v3000, %v2499
    %vm3014 = vcmask 392192
    %v3016 = vsel %vm3014, %v3003, %v2527
    %v3018 = vsel %vm3014, %v3005, %v2529
    %v3020 = vsel %vm3014, %v3007, %v2531
    %v3022 = vsel %vm3014, %v3009, %v2533
    %v3024 = vsel %vm3014, %v3011, %v2535
    %v3026 = vsel %vm3014, %v3013, %v2537
    %vm3027 = vcmask 523264
    %v3029 = vsel %vm3027, %v3016, %v2565
    %v3031 = vsel %vm3027, %v3018, %v2567
    %v3033 = vsel %vm3027, %v3020, %v2569
    %v3035 = vsel %vm3027, %v3022, %v2571
    %v3037 = vsel %vm3027, %v3024, %v2573
    %v3039 = vsel %vm3027, %v3026, %v2575
    %vm3040 = vcmask 654336
    %v3042 = vsel %vm3040, %v3029, %v2603
    %v3044 = vsel %vm3040, %v3031, %v2605
    %v3046 = vsel %vm3040, %v3033, %v2607
    %v3048 = vsel %vm3040, %v3035, %v2609
    %v3050 = vsel %vm3040, %v3037, %v2611
    %v3052 = vsel %vm3040, %v3039, %v2613
    %vm3053 = vcmask 785408
    %v3055 = vsel %vm3053, %v3042, %v2641
    %v3057 = vsel %vm3053, %v3044, %v2643
    %v3059 = vsel %vm3053, %v3046, %v2645
    %v3061 = vsel %vm3053, %v3048, %v2647
    %v3063 = vsel %vm3053, %v3050, %v2649
    %v3065 = vsel %vm3053, %v3052, %v2651
    %vm3066 = vcmask 916480
    %v3068 = vsel %vm3066, %v3055, %v2679
    %v3071 = vsel %vm3066, %v3057, %v2681
    %v3074 = vsel %vm3066, %v3059, %v2683
    %v3076 = vsel %vm3066, %v3061, %v2685
    %v3079 = vsel %vm3066, %v3063, %v2687
    %v3082 = vsel %vm3066, %v3065, %v2689
    %v3085 = vsel %vm2982, %v2710, %v2743
    %v3088 = vsel %vm2982, %v2711, %v2745
    %v3091 = vsel %vm2982, %v2712, %v2747
    %v3094 = vsel %vm2982, %v2713, %v2749
    %v3097 = vsel %vm2982, %v2714, %v2751
    %v3100 = vsel %vm2982, %v2715, %v2753
    %v3102 = vsel %vm3001, %v3085, %v2781
    %v3104 = vsel %vm3001, %v3088, %v2783
    %v3106 = vsel %vm3001, %v3091, %v2785
    %v3108 = vsel %vm3001, %v3094, %v2787
    %v3110 = vsel %vm3001, %v3097, %v2789
    %v3112 = vsel %vm3001, %v3100, %v2791
    %v3114 = vsel %vm3014, %v3102, %v2819
    %v3116 = vsel %vm3014, %v3104, %v2821
    %v3118 = vsel %vm3014, %v3106, %v2823
    %v3120 = vsel %vm3014, %v3108, %v2825
    %v3122 = vsel %vm3014, %v3110, %v2827
    %v3124 = vsel %vm3014, %v3112, %v2829
    %v3126 = vsel %vm3027, %v3114, %v2857
    %v3128 = vsel %vm3027, %v3116, %v2859
    %v3130 = vsel %vm3027, %v3118, %v2861
    %v3132 = vsel %vm3027, %v3120, %v2863
    %v3134 = vsel %vm3027, %v3122, %v2865
    %v3136 = vsel %vm3027, %v3124, %v2867
    %v3138 = vsel %vm3040, %v3126, %v2895
    %v3140 = vsel %vm3040, %v3128, %v2897
    %v3142 = vsel %vm3040, %v3130, %v2899
    %v3144 = vsel %vm3040, %v3132, %v2901
    %v3146 = vsel %vm3040, %v3134, %v2903
    %v3148 = vsel %vm3040, %v3136, %v2905
    %v3150 = vsel %vm3053, %v3138, %v2933
    %v3152 = vsel %vm3053, %v3140, %v2935
    %v3154 = vsel %vm3053, %v3142, %v2937
    %v3156 = vsel %vm3053, %v3144, %v2939
    %v3158 = vsel %vm3053, %v3146, %v2941
    %v3160 = vsel %vm3053, %v3148, %v2943
    %v3162 = vsel %vm3066, %v3150, %v2971
    %v3165 = vsel %vm3066, %v3152, %v2973
    %v3168 = vsel %vm3066, %v3154, %v2975
    %v3170 = vsel %vm3066, %v3156, %v2977
    %v3173 = vsel %vm3066, %v3158, %v2979
    %v3176 = vsel %vm3066, %v3160, %v2981
    %v3177 = vld [vmem:[%s1] sm:$0xf]
    %v3178 = vld [vmem:[%s2] sm:$0xff]
    %3180 = vset.pattern.permute.xlu0 0
    %3181 = vperm.xlu0 %3180, %v3178
    %v3182 = vpop.permute.xlu0 %3181
    %vm3184 = vcmask 293888
    %v3186 = vsel %vm3184, %v3177, 0
    %vm3188 = vcmask 1041408
    %v3189 = vsel %vm3188, %v3074, 0
    %v3191 = vsel %vm3188, %v3168, 0
    %3193 = vmatprep.subr.bf16.mxu0 %v3162
    %3194 = vmatpush1.bf16.msra.mxu0 %v3068
    %3195 = vmatprep.subr.bf16.mxu0 %v3165
    %3196 = vmatpush1.bf16.msra.mxu0 %v3071
    %3197 = vmatprep.subr.bf16.mxu0 %v3191
    %3198 = vmatpush1.bf16.msra.mxu0 %v3189
    %3199 = vmatprep.subr.bf16.mxu0 0
    %3200 = vmatpush1.bf16.msra.mxu0 0
    %3201 = vmatprep.subr.bf16.mxu0 0
    %3202 = vmatpush1.bf16.msra.mxu0 0
    %3203 = vmatprep.subr.bf16.mxu0 0
    %3204 = vmatpush1.bf16.msra.mxu0 0
    %3205 = vmatprep.subr.bf16.mxu0 0
    %3206 = vmatpush1.bf16.msra.mxu0 0
    %3207 = vmatprep.subr.bf16.mxu0 0
    %3208 = vmatpush1.bf16.msra.mxu0 0
    %3209 = vmatprep.subr.bf16.mxu0 0
    %3210 = vmatpush1.bf16.msra.mxu0 0
    %3211 = vmatprep.subr.bf16.mxu0 0
    %3212 = vmatpush1.bf16.msra.mxu0 0
    %3213 = vmatprep.subr.bf16.mxu0 0
    %3214 = vmatpush1.bf16.msra.mxu0 0
    %3215 = vmatprep.subr.bf16.mxu0 0
    %3216 = vmatpush1.bf16.msra.mxu0 0
    %3217 = vmatprep.subr.bf16.mxu0 0
    %3218 = vmatpush1.bf16.msra.mxu0 0
    %3219 = vmatprep.subr.bf16.mxu0 0
    %3220 = vmatpush1.bf16.msra.mxu0 0
    %3221 = vmatprep.subr.bf16.mxu0 0
    %3222 = vmatpush1.bf16.msra.mxu0 0
    %3223 = vmatprep.subr.bf16.mxu0 0
    %3224 = vmatpush1.bf16.msra.mxu0 0
    %3225 = vmatprep.mubr.bf16.mxu0 0
    %3226 = vmatmul.mubr.bf16.gmra.mrb[0].mxu0 %v3186
    %v3227 = vpop.f32.mrb[0].mxu0
    %v3228 = vadd.f32 %v3182, %v3227
    %v3229 = vpop.f32.mrb[0].mxu0
    %v3230 = vadd.f32 %v3182, %v3229
    %v3231 = vpop.f32.mrb[0].mxu0
    %v3232 = vpop.f32.mrb[0].mxu0
    %3233 = vdwg.mxu0
    %vm3234 = vcmp.gt.f32.partialorder %v3228, 0.0
    %vm3235 = vcmp.gt.f32.partialorder %v3230, 0.0
    %v3236 = vmul.f32 %v3228, 0.1
    %v3237 = vmul.f32 %v3230, 0.1
    %v3238 = vsel %vm3234, %v3228, %v3236
    %v3239 = vsel %vm3235, %v3230, %v3237
    %3240 = vst [vmem:[#allocation2] sm:$0xff] %v3238
    %3241 = vst [vmem:[#allocation2 + $0x8] sm:$0xff] %v3239
    %v3242 = vsel %vm3188, %v3082, 0
    %v3244 = vsel %vm3188, %v3176, 0
    %3246 = vmatprep.subr.bf16.mxu0 %v3170
    %3247 = vmatpush1.bf16.msra.mxu0 %v3076
    %3248 = vmatprep.subr.bf16.mxu0 %v3173
    %3249 = vmatpush1.bf16.msra.mxu0 %v3079
    %3250 = vmatprep.subr.bf16.mxu0 %v3244
    %3251 = vmatpush1.bf16.msra.mxu0 %v3242
    %3252 = vmatprep.subr.bf16.mxu0 0
    %3253 = vmatpush1.bf16.msra.mxu0 0
    %3254 = vmatprep.subr.bf16.mxu0 0
    %3255 = vmatpush1.bf16.msra.mxu0 0
    %3256 = vmatprep.subr.bf16.mxu0 0
    %3257 = vmatpush1.bf16.msra.mxu0 0
    %3258 = vmatprep.subr.bf16.mxu0 0
    %3259 = vmatpush1.bf16.msra.mxu0 0
    %3260 = vmatprep.subr.bf16.mxu0 0
    %3261 = vmatpush1.bf16.msra.mxu0 0
    %3262 = vmatprep.subr.bf16.mxu0 0
    %3263 = vmatpush1.bf16.msra.mxu0 0
    %3264 = vmatprep.subr.bf16.mxu0 0
    %3265 = vmatpush1.bf16.msra.mxu0 0
    %3266 = vmatprep.subr.bf16.mxu0 0
    %3267 = vmatpush1.bf16.msra.mxu0 0
    %3268 = vmatprep.subr.bf16.mxu0 0
    %3269 = vmatpush1.bf16.msra.mxu0 0
    %3270 = vmatprep.subr.bf16.mxu0 0
    %3271 = vmatpush1.bf16.msra.mxu0 0
    %3272 = vmatprep.subr.bf16.mxu0 0
    %3273 = vmatpush1.bf16.msra.mxu0 0
    %3274 = vmatprep.subr.bf16.mxu0 0
    %3275 = vmatpush1.bf16.msra.mxu0 0
    %3276 = vmatprep.subr.bf16.mxu0 0
    %3277 = vmatpush1.bf16.msra.mxu0 0
    %3278 = vmatprep.mubr.bf16.mxu0 0
    %3279 = vmatmul.mubr.bf16.gmra.mrb[0].mxu0 %v3186
    %v3280 = vpop.f32.mrb[0].mxu0
    %v3281 = vadd.f32 %v3182, %v3280
    %v3282 = vpop.f32.mrb[0].mxu0
    %v3283 = vadd.f32 %v3182, %v3282
    %v3284 = vpop.f32.mrb[0].mxu0
    %v3285 = vpop.f32.mrb[0].mxu0
    %3286 = vdwg.mxu0
    %vm3287 = vcmp.gt.f32.partialorder %v3281, 0.0
    %vm3288 = vcmp.gt.f32.partialorder %v3283, 0.0
    %v3289 = vmul.f32 %v3281, 0.1
    %v3290 = vmul.f32 %v3283, 0.1
    %v3291 = vsel %vm3287, %v3281, %v3289
    %v3292 = vsel %vm3288, %v3283, %v3290
    %s3293 = scalar_lea.vmem [#allocation2], 16
    %3294 = vst [vmem:[%s3293] sm:$0xff] %v3291
    %3295 = vst [vmem:[%s3293 + $0x8] sm:$0xff] %v3292
    // Predicated region
    $region14: #{tpu_custom_call.1} parent=1 // pred_check
      _
    $region15: #{tpu_custom_call.1} parent=1 // pred_check_branch
      %3297 = sbr.rel (0) target = $region17
    $region16: #{tpu_custom_call.1} parent=1 // pred_region
      %s3299 = ssub.s32 512, 512
      %3300 = vsyncadd [#allocation3], %s3299
      %s3301 = sshll.u32 [#allocation2], 4
      %s3302 = int_to_ptr.vmem [resolvable:$true] %s3301
      %3307 = dma.vmem_to_hbm [thread:$0]  %s3302, 512, %s3, [#allocation3], 256, 256, 16
    $region17: #{tpu_custom_call.1} parent=1 // pred_fallthru
      _
    // Predicated region
    $region18: #{tpu_custom_call.1} parent=1 // pred_check
      _
    $region19: #{tpu_custom_call.1} parent=1 // pred_check_branch
      %3309 = sbr.rel (0) target = $region21
    $region20: #{tpu_custom_call.1} parent=1 // pred_region
      %3310 = dma.done [#allocation3], 512
    $region21: #{tpu_custom_call.1} parent=1 // pred_fallthru
      _
    %3311 = vsyncpa [#allocation3], 1

</llo_original>
